<compile_context>
chip_gen: v5e
topology: v5e:2x2
jax: 0.10.0
libtpu: 0.0.40
codegen_flags: <defaults>
</compile_context>

<pallas_src>
import jax
import jax.numpy as jnp
from jax.experimental import pallas as pl
from jax.experimental.pallas import tpu as pltpu

# ---------------- model hyperparameters (small, consistent with the module) ----------------
NUM_LOCS    = 128   # num_locs  (fc output / loc embedding vocab)
LOC_EMB     = 16    # loc_emb_size
MIN_SEQ_LEN = 32    # min_seq_len (tim embedding vocab)
TIM_EMB     = 16    # tim_emb_size
HIDDEN      = 32    # hidden_size (logical)
SEQ         = 8     # sequence length (batch = 1, as in the reference forward)
INPUT       = LOC_EMB + TIM_EMB

G = 128             # per-gate block width padded to one full vreg lane group (N dim only)

_SELU_ALPHA = 1.6732632423543772
_SELU_SCALE = 1.0507009873554805


# --------------------------------- Pallas kernel ---------------------------------
def _traj_kernel(loc_ref, tim_ref, ploc_ref, ptim_ref,
                 whh_ref, bgi_ref, bhn_ref, wfc_ref, bfc_ref, out_ref):
    H = HIDDEN

    # ---- embedding + input projection (fused at pack time into P_loc / P_tim) ----
    # Select rows with one-hot matmuls built from iota-compare (no dynamic gather).
    loc_ids = loc_ref[...]                                            # (S, 1) int32
    tim_ids = tim_ref[...]                                            # (S, 1) int32
    oh_loc = (jax.lax.broadcasted_iota(jnp.int32, (SEQ, NUM_LOCS), 1)
              == loc_ids).astype(jnp.float32)                         # (S, NUM_LOCS)
    oh_tim = (jax.lax.broadcasted_iota(jnp.int32, (SEQ, MIN_SEQ_LEN), 1)
              == tim_ids).astype(jnp.float32)                         # (S, MIN_SEQ_LEN)
    # TODO(synk): nn.Dropout(p=0.3) on x omitted (eval/inference -> identity).

    # gi[:, g*G:(g+1)*G] = x @ W_i{g}^T + b_i{g}  (b_hr / b_hz already folded in)
    gi = (jnp.dot(oh_loc, ploc_ref[...], preferred_element_type=jnp.float32)
          + jnp.dot(oh_tim, ptim_ref[...], preferred_element_type=jnp.float32)
          + bgi_ref[...])                                             # (S, 3G)

    # ---- loop-invariant weight loads hoisted out of the unrolled recurrence ----
    whh = whh_ref[...]                                                # (H, 3G)  K = 32
    bhn = bhn_ref[...]                                                # (1, H)

    # ---- GRU recurrence: serial over time, fully unrolled, h kept (1, H) in registers ----
    h = jnp.zeros((1, H), jnp.float32)
    hs = []
    for t in range(SEQ):
        gi_t = gi[t:t + 1, :]                                         # (1, 3G) static slice
        gh = jnp.dot(h, whh, preferred_element_type=jnp.float32)      # (1, 3G), one matmul/step
        r = jax.nn.sigmoid(gi_t[:, 0:H]             + gh[:, 0:H])
        z = jax.nn.sigmoid(gi_t[:, G:G + H]         + gh[:, G:G + H])
        n = jnp.tanh(gi_t[:, 2 * G:2 * G + H] + r * (gh[:, 2 * G:2 * G + H] + bhn))
        h = (1.0 - z) * n + z * h
        hs.append(h)
    hid = jnp.concatenate(hs, axis=0)                                 # (S, H)

    # ---- SELU (exp argument clamped so the discarded branch can't overflow) ----
    act = _SELU_SCALE * jnp.where(
        hid > 0.0, hid, _SELU_ALPHA * (jnp.exp(jnp.minimum(hid, 0.0)) - 1.0))
    # TODO(synk): nn.Dropout(p=0.3) on the GRU output omitted (eval -> identity).

    # ---- final linear + log_softmax over locations (lane-dense (8, 128) output) ----
    logits = jnp.dot(act, wfc_ref[...],
                     preferred_element_type=jnp.float32) + bfc_ref[...]   # (S, V)
    m = jnp.max(logits, axis=-1, keepdims=True)
    shifted = logits - m
    out_ref[...] = shifted - jnp.log(jnp.sum(jnp.exp(shifted), axis=-1, keepdims=True))


# --------------------------------- wrapper ---------------------------------
def traj_pre_simple_forward(loc, tim, packed):
    """loc, tim: int32 (S, 1) index sequences. Returns (S, NUM_LOCS) log-probabilities."""
    loc_i = loc.reshape(SEQ, 1).astype(jnp.int32)
    tim_i = tim.reshape(SEQ, 1).astype(jnp.int32)

    vmem = pl.BlockSpec(memory_space=pltpu.MemorySpace.VMEM)

    return pl.pallas_call(
        _traj_kernel,
        out_shape=jax.ShapeDtypeStruct((SEQ, NUM_LOCS), jnp.float32),
        in_specs=[vmem] * 9,
        out_specs=vmem,
    )(loc_i, tim_i,
      packed["p_loc"], packed["p_tim"], packed["w_hh_t"],
      packed["b_gi"], packed["b_hn"], packed["w_fc_t"], packed["b_fc"])


# --------------------------------- parameters ---------------------------------
def init_params(key):
    """Raw parameters in PyTorch layout (GRU gate order [r | z | n]); biases = 0 per init_weights."""
    ks = jax.random.split(key, 6)
    emb_loc = jax.random.normal(ks[0], (NUM_LOCS, LOC_EMB), jnp.float32)
    emb_tim = jax.random.normal(ks[1], (MIN_SEQ_LEN, TIM_EMB), jnp.float32)

    # GRU weight_ih_l0: (3H, I), xavier_uniform
    lim_ih = (6.0 / (3 * HIDDEN + INPUT)) ** 0.5
    w_ih = jax.random.uniform(ks[2], (3 * HIDDEN, INPUT), jnp.float32, -lim_ih, lim_ih)

    # GRU weight_hh_l0: (3H, H), orthogonal (three independent (H, H) orthogonal blocks)
    blocks = []
    for kk in jax.random.split(ks[3], 3):
        a = jax.random.normal(kk, (HIDDEN, HIDDEN), jnp.float32)
        qb, rb = jnp.linalg.qr(a)
        qb = qb * jnp.sign(jnp.diag(rb))[None, :]
        blocks.append(qb)
    w_hh = jnp.concatenate(blocks, axis=0)                            # (3H, H)

    b_ih = jnp.zeros((3 * HIDDEN,), jnp.float32)
    b_hh = jnp.zeros((3 * HIDDEN,), jnp.float32)

    # fc: Linear(H, num_locs), PyTorch default uniform(-1/sqrt(H), 1/sqrt(H))
    lim_fc = 1.0 / (HIDDEN ** 0.5)
    w_fc = jax.random.uniform(ks[4], (NUM_LOCS, HIDDEN), jnp.float32, -lim_fc, lim_fc)
    b_fc = jax.random.uniform(ks[5], (NUM_LOCS,), jnp.float32, -lim_fc, lim_fc)

    return dict(emb_loc=emb_loc, emb_tim=emb_tim, w_ih=w_ih, w_hh=w_hh,
                b_ih=b_ih, b_hh=b_hh, w_fc=w_fc, b_fc=b_fc)


def _pad_gates_lanes(w_t, h, g):
    """(K, 3h) gate-concatenated along lanes -> (K, 3g) with each gate block lane-padded."""
    k = w_t.shape[0]
    out = jnp.zeros((k, 3 * g), w_t.dtype)
    for i in range(3):
        out = out.at[:, i * g: i * g + h].set(w_t[:, i * h:(i + 1) * h])
    return out


def pack_params(p):
    """One-time repack of raw params into the kernel layout (K dims kept at 32, gate N padded)."""
    H = HIDDEN
    w_ih_t = p["w_ih"].T                                              # (I, 3H)

    # embedding fused with input projection: P = E @ W_ih_part^T, then gate-lane-pad to 3G
    p_loc = _pad_gates_lanes(p["emb_loc"] @ w_ih_t[:LOC_EMB], H, G)   # (NUM_LOCS, 3G)
    p_tim = _pad_gates_lanes(p["emb_tim"] @ w_ih_t[LOC_EMB:], H, G)   # (MIN_SEQ_LEN, 3G)

    # recurrent weights: keep K = HIDDEN (no contraction-dim zero padding)
    w_hh_t = _pad_gates_lanes(p["w_hh"].T, H, G)                      # (H, 3G)

    # fold b_ih (all gates) plus the r/z slices of b_hh into the hoisted gi bias
    b_gi_raw = p["b_ih"] + jnp.concatenate(
        [p["b_hh"][:2 * H], jnp.zeros((H,), jnp.float32)])
    b_gi = _pad_gates_lanes(b_gi_raw[None, :], H, G)                  # (1, 3G)
    b_hn = p["b_hh"][2 * H:][None, :]                                 # (1, H)

    w_fc_t = p["w_fc"].T                                              # (H, NUM_LOCS)
    b_fc = p["b_fc"][None, :]                                         # (1, NUM_LOCS)

    return dict(p_loc=p_loc, p_tim=p_tim, w_hh_t=w_hh_t,
                b_gi=b_gi, b_hn=b_hn, w_fc_t=w_fc_t, b_fc=b_fc)


# ------------------------- pure-JAX reference (for verification) -------------------------
def reference_forward(loc, tim, p):
    x = jnp.concatenate([p["emb_loc"][loc[:, 0]], p["emb_tim"][tim[:, 0]]], axis=-1)
    H = HIDDEN
    h = jnp.zeros((H,), jnp.float32)
    outs = []
    for t in range(x.shape[0]):
        gi = p["w_ih"] @ x[t] + p["b_ih"]
        gh = p["w_hh"] @ h + p["b_hh"]
        r = jax.nn.sigmoid(gi[:H] + gh[:H])
        z = jax.nn.sigmoid(gi[H:2 * H] + gh[H:2 * H])
        n = jnp.tanh(gi[2 * H:] + r * gh[2 * H:])
        h = (1.0 - z) * n + z * h
        outs.append(h)
    out = jnp.stack(outs)                                             # (S, H)
    act = _SELU_SCALE * jnp.where(out > 0, out, _SELU_ALPHA * (jnp.exp(out) - 1.0))
    logits = act @ p["w_fc"].T + p["b_fc"]
    m = jnp.max(logits, axis=-1, keepdims=True)
    return (logits - m) - jnp.log(jnp.sum(jnp.exp(logits - m), axis=-1, keepdims=True))


if __name__ == "__main__":
    key = jax.random.PRNGKey(0)
    kp, kl, kt, kb = jax.random.split(key, 4)
    params = init_params(kp)

    loc = jax.random.randint(kl, (SEQ, 1), 0, NUM_LOCS, dtype=jnp.int32)
    tim = jax.random.randint(kt, (SEQ, 1), 0, MIN_SEQ_LEN, dtype=jnp.int32)

    # ---- zero-bias case (matches the module's init_weights) ----
    score = traj_pre_simple_forward(loc, tim, pack_params(params))
    jax.block_until_ready(score)
    assert score.shape == (SEQ, NUM_LOCS)
    # rows of log_softmax must exp-sum to 1
    assert bool(jnp.allclose(jnp.sum(jnp.exp(score), axis=-1), 1.0, atol=1e-4))
    ref = reference_forward(loc, tim, params)
    assert bool(jnp.allclose(score, ref, atol=5e-4, rtol=5e-4))

    # ---- nonzero-bias cross-check (exercises b_ih / b_hh folding and the b_hn-inside-r path) ----
    kb1, kb2 = jax.random.split(kb)
    params_b = dict(params,
                    b_ih=0.1 * jax.random.normal(kb1, (3 * HIDDEN,), jnp.float32),
                    b_hh=0.1 * jax.random.normal(kb2, (3 * HIDDEN,), jnp.float32))
    score_b = traj_pre_simple_forward(loc, tim, pack_params(params_b))
    jax.block_until_ready(score_b)
    ref_b = reference_forward(loc, tim, params_b)
    assert bool(jnp.allclose(score_b, ref_b, atol=5e-4, rtol=5e-4))

    print("KERNEL_OK")
</pallas_src>

<mosaic_0001>
module attributes {stable_mosaic.version = 11 : i64} {
  func.func @_traj_kernel(%arg0: memref<8x1xi32, #tpu.memory_space<vmem>>, %arg1: memref<8x1xi32, #tpu.memory_space<vmem>>, %arg2: memref<128x384xf32, #tpu.memory_space<vmem>>, %arg3: memref<32x384xf32, #tpu.memory_space<vmem>>, %arg4: memref<32x384xf32, #tpu.memory_space<vmem>>, %arg5: memref<1x384xf32, #tpu.memory_space<vmem>>, %arg6: memref<1x32xf32, #tpu.memory_space<vmem>>, %arg7: memref<32x128xf32, #tpu.memory_space<vmem>>, %arg8: memref<1x128xf32, #tpu.memory_space<vmem>>, %arg9: memref<8x128xf32, #tpu.memory_space<vmem>>) attributes {dimension_semantics = [], scalar_prefetch = 0 : i64, scratch_operands = 0 : i64, tpu.core_type = #tpu.core_type<tc>} {
    %c0 = arith.constant 0 : index
    %c0_0 = arith.constant 0 : index
    %0 = vector.load %arg0[%c0, %c0_0] : memref<8x1xi32, #tpu.memory_space<vmem>>, vector<8x1xi32>
    %c0_1 = arith.constant 0 : index
    %c0_2 = arith.constant 0 : index
    %1 = vector.load %arg1[%c0_1, %c0_2] : memref<8x1xi32, #tpu.memory_space<vmem>>, vector<8x1xi32>
    %2 = tpu.iota {dimensions = array<i32: 1>} : vector<8x128xi32>
    %3 = vector.broadcast %0 : vector<8x1xi32> to vector<8x128xi32>
    %4 = arith.cmpi eq, %2, %3 : vector<8x128xi32>
    %5 = arith.extui %4 : vector<8x128xi1> to vector<8x128xi32>
    %6 = arith.sitofp %5 : vector<8x128xi32> to vector<8x128xf32>
    %7 = tpu.iota {dimensions = array<i32: 1>} : vector<8x32xi32>
    %8 = vector.broadcast %1 : vector<8x1xi32> to vector<8x32xi32>
    %9 = arith.cmpi eq, %7, %8 : vector<8x32xi32>
    %10 = arith.extui %9 : vector<8x32xi1> to vector<8x32xi32>
    %11 = arith.sitofp %10 : vector<8x32xi32> to vector<8x32xf32>
    %c0_3 = arith.constant 0 : index
    %c0_4 = arith.constant 0 : index
    %12 = vector.load %arg2[%c0_3, %c0_4] : memref<128x384xf32, #tpu.memory_space<vmem>>, vector<128x384xf32>
    %cst = arith.constant dense<0.000000e+00> : vector<8x384xf32>
    %13 = tpu.matmul %6, %12, %cst {dimension_numbers = #tpu.dot_dimension_numbers<[1], [0], [0], [1], [0, 0, 1, 1], [], []>} : vector<8x128xf32>, vector<128x384xf32>, vector<8x384xf32> -> vector<8x384xf32>
    %c0_5 = arith.constant 0 : index
    %c0_6 = arith.constant 0 : index
    %14 = vector.load %arg3[%c0_5, %c0_6] : memref<32x384xf32, #tpu.memory_space<vmem>>, vector<32x384xf32>
    %cst_7 = arith.constant dense<0.000000e+00> : vector<8x384xf32>
    %15 = tpu.matmul %11, %14, %cst_7 {dimension_numbers = #tpu.dot_dimension_numbers<[1], [0], [0], [1], [0, 0, 1, 1], [], []>} : vector<8x32xf32>, vector<32x384xf32>, vector<8x384xf32> -> vector<8x384xf32>
    %16 = arith.addf %13, %15 : vector<8x384xf32>
    %c0_8 = arith.constant 0 : index
    %c0_9 = arith.constant 0 : index
    %17 = vector.load %arg5[%c0_8, %c0_9] : memref<1x384xf32, #tpu.memory_space<vmem>>, vector<1x384xf32>
    %18 = vector.broadcast %17 : vector<1x384xf32> to vector<8x384xf32>
    %19 = arith.addf %16, %18 : vector<8x384xf32>
    %c0_10 = arith.constant 0 : index
    %c0_11 = arith.constant 0 : index
    %20 = vector.load %arg4[%c0_10, %c0_11] : memref<32x384xf32, #tpu.memory_space<vmem>>, vector<32x384xf32>
    %c0_12 = arith.constant 0 : index
    %c0_13 = arith.constant 0 : index
    %21 = vector.load %arg6[%c0_12, %c0_13] : memref<1x32xf32, #tpu.memory_space<vmem>>, vector<1x32xf32>
    %cst_14 = arith.constant 0.000000e+00 : f32
    %22 = vector.broadcast %cst_14 : f32 to vector<1x32xf32>
    %23 = vector.extract_strided_slice %19 {offsets = [0, 0], sizes = [1, 384], strides = [1, 1]} : vector<8x384xf32> to vector<1x384xf32>
    %cst_15 = arith.constant dense<0.000000e+00> : vector<1x384xf32>
    %24 = tpu.matmul %22, %20, %cst_15 {dimension_numbers = #tpu.dot_dimension_numbers<[1], [0], [0], [1], [0, 0, 1, 1], [], []>} : vector<1x32xf32>, vector<32x384xf32>, vector<1x384xf32> -> vector<1x384xf32>
    %25 = vector.extract_strided_slice %23 {offsets = [0, 0], sizes = [1, 32], strides = [1, 1]} : vector<1x384xf32> to vector<1x32xf32>
    %26 = vector.extract_strided_slice %24 {offsets = [0, 0], sizes = [1, 32], strides = [1, 1]} : vector<1x384xf32> to vector<1x32xf32>
    %27 = arith.addf %25, %26 : vector<1x32xf32>
    %28 = arith.negf %27 : vector<1x32xf32>
    %29 = math.exp %28 : vector<1x32xf32>
    %cst_16 = arith.constant 1.000000e+00 : f32
    %30 = vector.broadcast %cst_16 : f32 to vector<1x32xf32>
    %31 = arith.addf %30, %29 : vector<1x32xf32>
    %32 = arith.divf %30, %31 : vector<1x32xf32>
    %33 = vector.extract_strided_slice %23 {offsets = [0, 128], sizes = [1, 32], strides = [1, 1]} : vector<1x384xf32> to vector<1x32xf32>
    %34 = vector.extract_strided_slice %24 {offsets = [0, 128], sizes = [1, 32], strides = [1, 1]} : vector<1x384xf32> to vector<1x32xf32>
    %35 = arith.addf %33, %34 : vector<1x32xf32>
    %36 = arith.negf %35 : vector<1x32xf32>
    %37 = math.exp %36 : vector<1x32xf32>
    %cst_17 = arith.constant 1.000000e+00 : f32
    %38 = vector.broadcast %cst_17 : f32 to vector<1x32xf32>
    %39 = arith.addf %38, %37 : vector<1x32xf32>
    %40 = arith.divf %38, %39 : vector<1x32xf32>
    %41 = vector.extract_strided_slice %23 {offsets = [0, 256], sizes = [1, 32], strides = [1, 1]} : vector<1x384xf32> to vector<1x32xf32>
    %42 = vector.extract_strided_slice %24 {offsets = [0, 256], sizes = [1, 32], strides = [1, 1]} : vector<1x384xf32> to vector<1x32xf32>
    %43 = arith.addf %42, %21 : vector<1x32xf32>
    %44 = arith.mulf %32, %43 : vector<1x32xf32>
    %45 = arith.addf %41, %44 : vector<1x32xf32>
    %46 = math.tanh %45 : vector<1x32xf32>
    %cst_18 = arith.constant 1.000000e+00 : f32
    %47 = vector.broadcast %cst_18 : f32 to vector<1x32xf32>
    %48 = arith.subf %47, %40 : vector<1x32xf32>
    %49 = arith.mulf %48, %46 : vector<1x32xf32>
    %50 = arith.mulf %40, %22 : vector<1x32xf32>
    %51 = arith.addf %49, %50 : vector<1x32xf32>
    %52 = vector.extract_strided_slice %19 {offsets = [1, 0], sizes = [1, 384], strides = [1, 1]} : vector<8x384xf32> to vector<1x384xf32>
    %cst_19 = arith.constant dense<0.000000e+00> : vector<1x384xf32>
    %53 = tpu.matmul %51, %20, %cst_19 {dimension_numbers = #tpu.dot_dimension_numbers<[1], [0], [0], [1], [0, 0, 1, 1], [], []>} : vector<1x32xf32>, vector<32x384xf32>, vector<1x384xf32> -> vector<1x384xf32>
    %54 = vector.extract_strided_slice %52 {offsets = [0, 0], sizes = [1, 32], strides = [1, 1]} : vector<1x384xf32> to vector<1x32xf32>
    %55 = vector.extract_strided_slice %53 {offsets = [0, 0], sizes = [1, 32], strides = [1, 1]} : vector<1x384xf32> to vector<1x32xf32>
    %56 = arith.addf %54, %55 : vector<1x32xf32>
    %57 = arith.negf %56 : vector<1x32xf32>
    %58 = math.exp %57 : vector<1x32xf32>
    %cst_20 = arith.constant 1.000000e+00 : f32
    %59 = vector.broadcast %cst_20 : f32 to vector<1x32xf32>
    %60 = arith.addf %59, %58 : vector<1x32xf32>
    %61 = arith.divf %59, %60 : vector<1x32xf32>
    %62 = vector.extract_strided_slice %52 {offsets = [0, 128], sizes = [1, 32], strides = [1, 1]} : vector<1x384xf32> to vector<1x32xf32>
    %63 = vector.extract_strided_slice %53 {offsets = [0, 128], sizes = [1, 32], strides = [1, 1]} : vector<1x384xf32> to vector<1x32xf32>
    %64 = arith.addf %62, %63 : vector<1x32xf32>
    %65 = arith.negf %64 : vector<1x32xf32>
    %66 = math.exp %65 : vector<1x32xf32>
    %cst_21 = arith.constant 1.000000e+00 : f32
    %67 = vector.broadcast %cst_21 : f32 to vector<1x32xf32>
    %68 = arith.addf %67, %66 : vector<1x32xf32>
    %69 = arith.divf %67, %68 : vector<1x32xf32>
    %70 = vector.extract_strided_slice %52 {offsets = [0, 256], sizes = [1, 32], strides = [1, 1]} : vector<1x384xf32> to vector<1x32xf32>
    %71 = vector.extract_strided_slice %53 {offsets = [0, 256], sizes = [1, 32], strides = [1, 1]} : vector<1x384xf32> to vector<1x32xf32>
    %72 = arith.addf %71, %21 : vector<1x32xf32>
    %73 = arith.mulf %61, %72 : vector<1x32xf32>
    %74 = arith.addf %70, %73 : vector<1x32xf32>
    %75 = math.tanh %74 : vector<1x32xf32>
    %cst_22 = arith.constant 1.000000e+00 : f32
    %76 = vector.broadcast %cst_22 : f32 to vector<1x32xf32>
    %77 = arith.subf %76, %69 : vector<1x32xf32>
    %78 = arith.mulf %77, %75 : vector<1x32xf32>
    %79 = arith.mulf %69, %51 : vector<1x32xf32>
    %80 = arith.addf %78, %79 : vector<1x32xf32>
    %81 = vector.extract_strided_slice %19 {offsets = [2, 0], sizes = [1, 384], strides = [1, 1]} : vector<8x384xf32> to vector<1x384xf32>
    %cst_23 = arith.constant dense<0.000000e+00> : vector<1x384xf32>
    %82 = tpu.matmul %80, %20, %cst_23 {dimension_numbers = #tpu.dot_dimension_numbers<[1], [0], [0], [1], [0, 0, 1, 1], [], []>} : vector<1x32xf32>, vector<32x384xf32>, vector<1x384xf32> -> vector<1x384xf32>
    %83 = vector.extract_strided_slice %81 {offsets = [0, 0], sizes = [1, 32], strides = [1, 1]} : vector<1x384xf32> to vector<1x32xf32>
    %84 = vector.extract_strided_slice %82 {offsets = [0, 0], sizes = [1, 32], strides = [1, 1]} : vector<1x384xf32> to vector<1x32xf32>
    %85 = arith.addf %83, %84 : vector<1x32xf32>
    %86 = arith.negf %85 : vector<1x32xf32>
    %87 = math.exp %86 : vector<1x32xf32>
    %cst_24 = arith.constant 1.000000e+00 : f32
    %88 = vector.broadcast %cst_24 : f32 to vector<1x32xf32>
    %89 = arith.addf %88, %87 : vector<1x32xf32>
    %90 = arith.divf %88, %89 : vector<1x32xf32>
    %91 = vector.extract_strided_slice %81 {offsets = [0, 128], sizes = [1, 32], strides = [1, 1]} : vector<1x384xf32> to vector<1x32xf32>
    %92 = vector.extract_strided_slice %82 {offsets = [0, 128], sizes = [1, 32], strides = [1, 1]} : vector<1x384xf32> to vector<1x32xf32>
    %93 = arith.addf %91, %92 : vector<1x32xf32>
    %94 = arith.negf %93 : vector<1x32xf32>
    %95 = math.exp %94 : vector<1x32xf32>
    %cst_25 = arith.constant 1.000000e+00 : f32
    %96 = vector.broadcast %cst_25 : f32 to vector<1x32xf32>
    %97 = arith.addf %96, %95 : vector<1x32xf32>
    %98 = arith.divf %96, %97 : vector<1x32xf32>
    %99 = vector.extract_strided_slice %81 {offsets = [0, 256], sizes = [1, 32], strides = [1, 1]} : vector<1x384xf32> to vector<1x32xf32>
    %100 = vector.extract_strided_slice %82 {offsets = [0, 256], sizes = [1, 32], strides = [1, 1]} : vector<1x384xf32> to vector<1x32xf32>
    %101 = arith.addf %100, %21 : vector<1x32xf32>
    %102 = arith.mulf %90, %101 : vector<1x32xf32>
    %103 = arith.addf %99, %102 : vector<1x32xf32>
    %104 = math.tanh %103 : vector<1x32xf32>
    %cst_26 = arith.constant 1.000000e+00 : f32
    %105 = vector.broadcast %cst_26 : f32 to vector<1x32xf32>
    %106 = arith.subf %105, %98 : vector<1x32xf32>
    %107 = arith.mulf %106, %104 : vector<1x32xf32>
    %108 = arith.mulf %98, %80 : vector<1x32xf32>
    %109 = arith.addf %107, %108 : vector<1x32xf32>
    %110 = vector.extract_strided_slice %19 {offsets = [3, 0], sizes = [1, 384], strides = [1, 1]} : vector<8x384xf32> to vector<1x384xf32>
    %cst_27 = arith.constant dense<0.000000e+00> : vector<1x384xf32>
    %111 = tpu.matmul %109, %20, %cst_27 {dimension_numbers = #tpu.dot_dimension_numbers<[1], [0], [0], [1], [0, 0, 1, 1], [], []>} : vector<1x32xf32>, vector<32x384xf32>, vector<1x384xf32> -> vector<1x384xf32>
    %112 = vector.extract_strided_slice %110 {offsets = [0, 0], sizes = [1, 32], strides = [1, 1]} : vector<1x384xf32> to vector<1x32xf32>
    %113 = vector.extract_strided_slice %111 {offsets = [0, 0], sizes = [1, 32], strides = [1, 1]} : vector<1x384xf32> to vector<1x32xf32>
    %114 = arith.addf %112, %113 : vector<1x32xf32>
    %115 = arith.negf %114 : vector<1x32xf32>
    %116 = math.exp %115 : vector<1x32xf32>
    %cst_28 = arith.constant 1.000000e+00 : f32
    %117 = vector.broadcast %cst_28 : f32 to vector<1x32xf32>
    %118 = arith.addf %117, %116 : vector<1x32xf32>
    %119 = arith.divf %117, %118 : vector<1x32xf32>
    %120 = vector.extract_strided_slice %110 {offsets = [0, 128], sizes = [1, 32], strides = [1, 1]} : vector<1x384xf32> to vector<1x32xf32>
    %121 = vector.extract_strided_slice %111 {offsets = [0, 128], sizes = [1, 32], strides = [1, 1]} : vector<1x384xf32> to vector<1x32xf32>
    %122 = arith.addf %120, %121 : vector<1x32xf32>
    %123 = arith.negf %122 : vector<1x32xf32>
    %124 = math.exp %123 : vector<1x32xf32>
    %cst_29 = arith.constant 1.000000e+00 : f32
    %125 = vector.broadcast %cst_29 : f32 to vector<1x32xf32>
    %126 = arith.addf %125, %124 : vector<1x32xf32>
    %127 = arith.divf %125, %126 : vector<1x32xf32>
    %128 = vector.extract_strided_slice %110 {offsets = [0, 256], sizes = [1, 32], strides = [1, 1]} : vector<1x384xf32> to vector<1x32xf32>
    %129 = vector.extract_strided_slice %111 {offsets = [0, 256], sizes = [1, 32], strides = [1, 1]} : vector<1x384xf32> to vector<1x32xf32>
    %130 = arith.addf %129, %21 : vector<1x32xf32>
    %131 = arith.mulf %119, %130 : vector<1x32xf32>
    %132 = arith.addf %128, %131 : vector<1x32xf32>
    %133 = math.tanh %132 : vector<1x32xf32>
    %cst_30 = arith.constant 1.000000e+00 : f32
    %134 = vector.broadcast %cst_30 : f32 to vector<1x32xf32>
    %135 = arith.subf %134, %127 : vector<1x32xf32>
    %136 = arith.mulf %135, %133 : vector<1x32xf32>
    %137 = arith.mulf %127, %109 : vector<1x32xf32>
    %138 = arith.addf %136, %137 : vector<1x32xf32>
    %139 = vector.extract_strided_slice %19 {offsets = [4, 0], sizes = [1, 384], strides = [1, 1]} : vector<8x384xf32> to vector<1x384xf32>
    %cst_31 = arith.constant dense<0.000000e+00> : vector<1x384xf32>
    %140 = tpu.matmul %138, %20, %cst_31 {dimension_numbers = #tpu.dot_dimension_numbers<[1], [0], [0], [1], [0, 0, 1, 1], [], []>} : vector<1x32xf32>, vector<32x384xf32>, vector<1x384xf32> -> vector<1x384xf32>
    %141 = vector.extract_strided_slice %139 {offsets = [0, 0], sizes = [1, 32], strides = [1, 1]} : vector<1x384xf32> to vector<1x32xf32>
    %142 = vector.extract_strided_slice %140 {offsets = [0, 0], sizes = [1, 32], strides = [1, 1]} : vector<1x384xf32> to vector<1x32xf32>
    %143 = arith.addf %141, %142 : vector<1x32xf32>
    %144 = arith.negf %143 : vector<1x32xf32>
    %145 = math.exp %144 : vector<1x32xf32>
    %cst_32 = arith.constant 1.000000e+00 : f32
    %146 = vector.broadcast %cst_32 : f32 to vector<1x32xf32>
    %147 = arith.addf %146, %145 : vector<1x32xf32>
    %148 = arith.divf %146, %147 : vector<1x32xf32>
    %149 = vector.extract_strided_slice %139 {offsets = [0, 128], sizes = [1, 32], strides = [1, 1]} : vector<1x384xf32> to vector<1x32xf32>
    %150 = vector.extract_strided_slice %140 {offsets = [0, 128], sizes = [1, 32], strides = [1, 1]} : vector<1x384xf32> to vector<1x32xf32>
    %151 = arith.addf %149, %150 : vector<1x32xf32>
    %152 = arith.negf %151 : vector<1x32xf32>
    %153 = math.exp %152 : vector<1x32xf32>
    %cst_33 = arith.constant 1.000000e+00 : f32
    %154 = vector.broadcast %cst_33 : f32 to vector<1x32xf32>
    %155 = arith.addf %154, %153 : vector<1x32xf32>
    %156 = arith.divf %154, %155 : vector<1x32xf32>
    %157 = vector.extract_strided_slice %139 {offsets = [0, 256], sizes = [1, 32], strides = [1, 1]} : vector<1x384xf32> to vector<1x32xf32>
    %158 = vector.extract_strided_slice %140 {offsets = [0, 256], sizes = [1, 32], strides = [1, 1]} : vector<1x384xf32> to vector<1x32xf32>
    %159 = arith.addf %158, %21 : vector<1x32xf32>
    %160 = arith.mulf %148, %159 : vector<1x32xf32>
    %161 = arith.addf %157, %160 : vector<1x32xf32>
    %162 = math.tanh %161 : vector<1x32xf32>
    %cst_34 = arith.constant 1.000000e+00 : f32
    %163 = vector.broadcast %cst_34 : f32 to vector<1x32xf32>
    %164 = arith.subf %163, %156 : vector<1x32xf32>
    %165 = arith.mulf %164, %162 : vector<1x32xf32>
    %166 = arith.mulf %156, %138 : vector<1x32xf32>
    %167 = arith.addf %165, %166 : vector<1x32xf32>
    %168 = vector.extract_strided_slice %19 {offsets = [5, 0], sizes = [1, 384], strides = [1, 1]} : vector<8x384xf32> to vector<1x384xf32>
    %cst_35 = arith.constant dense<0.000000e+00> : vector<1x384xf32>
    %169 = tpu.matmul %167, %20, %cst_35 {dimension_numbers = #tpu.dot_dimension_numbers<[1], [0], [0], [1], [0, 0, 1, 1], [], []>} : vector<1x32xf32>, vector<32x384xf32>, vector<1x384xf32> -> vector<1x384xf32>
    %170 = vector.extract_strided_slice %168 {offsets = [0, 0], sizes = [1, 32], strides = [1, 1]} : vector<1x384xf32> to vector<1x32xf32>
    %171 = vector.extract_strided_slice %169 {offsets = [0, 0], sizes = [1, 32], strides = [1, 1]} : vector<1x384xf32> to vector<1x32xf32>
    %172 = arith.addf %170, %171 : vector<1x32xf32>
    %173 = arith.negf %172 : vector<1x32xf32>
    %174 = math.exp %173 : vector<1x32xf32>
    %cst_36 = arith.constant 1.000000e+00 : f32
    %175 = vector.broadcast %cst_36 : f32 to vector<1x32xf32>
    %176 = arith.addf %175, %174 : vector<1x32xf32>
    %177 = arith.divf %175, %176 : vector<1x32xf32>
    %178 = vector.extract_strided_slice %168 {offsets = [0, 128], sizes = [1, 32], strides = [1, 1]} : vector<1x384xf32> to vector<1x32xf32>
    %179 = vector.extract_strided_slice %169 {offsets = [0, 128], sizes = [1, 32], strides = [1, 1]} : vector<1x384xf32> to vector<1x32xf32>
    %180 = arith.addf %178, %179 : vector<1x32xf32>
    %181 = arith.negf %180 : vector<1x32xf32>
    %182 = math.exp %181 : vector<1x32xf32>
    %cst_37 = arith.constant 1.000000e+00 : f32
    %183 = vector.broadcast %cst_37 : f32 to vector<1x32xf32>
    %184 = arith.addf %183, %182 : vector<1x32xf32>
    %185 = arith.divf %183, %184 : vector<1x32xf32>
    %186 = vector.extract_strided_slice %168 {offsets = [0, 256], sizes = [1, 32], strides = [1, 1]} : vector<1x384xf32> to vector<1x32xf32>
    %187 = vector.extract_strided_slice %169 {offsets = [0, 256], sizes = [1, 32], strides = [1, 1]} : vector<1x384xf32> to vector<1x32xf32>
    %188 = arith.addf %187, %21 : vector<1x32xf32>
    %189 = arith.mulf %177, %188 : vector<1x32xf32>
    %190 = arith.addf %186, %189 : vector<1x32xf32>
    %191 = math.tanh %190 : vector<1x32xf32>
    %cst_38 = arith.constant 1.000000e+00 : f32
    %192 = vector.broadcast %cst_38 : f32 to vector<1x32xf32>
    %193 = arith.subf %192, %185 : vector<1x32xf32>
    %194 = arith.mulf %193, %191 : vector<1x32xf32>
    %195 = arith.mulf %185, %167 : vector<1x32xf32>
    %196 = arith.addf %194, %195 : vector<1x32xf32>
    %197 = vector.extract_strided_slice %19 {offsets = [6, 0], sizes = [1, 384], strides = [1, 1]} : vector<8x384xf32> to vector<1x384xf32>
    %cst_39 = arith.constant dense<0.000000e+00> : vector<1x384xf32>
    %198 = tpu.matmul %196, %20, %cst_39 {dimension_numbers = #tpu.dot_dimension_numbers<[1], [0], [0], [1], [0, 0, 1, 1], [], []>} : vector<1x32xf32>, vector<32x384xf32>, vector<1x384xf32> -> vector<1x384xf32>
    %199 = vector.extract_strided_slice %197 {offsets = [0, 0], sizes = [1, 32], strides = [1, 1]} : vector<1x384xf32> to vector<1x32xf32>
    %200 = vector.extract_strided_slice %198 {offsets = [0, 0], sizes = [1, 32], strides = [1, 1]} : vector<1x384xf32> to vector<1x32xf32>
    %201 = arith.addf %199, %200 : vector<1x32xf32>
    %202 = arith.negf %201 : vector<1x32xf32>
    %203 = math.exp %202 : vector<1x32xf32>
    %cst_40 = arith.constant 1.000000e+00 : f32
    %204 = vector.broadcast %cst_40 : f32 to vector<1x32xf32>
    %205 = arith.addf %204, %203 : vector<1x32xf32>
    %206 = arith.divf %204, %205 : vector<1x32xf32>
    %207 = vector.extract_strided_slice %197 {offsets = [0, 128], sizes = [1, 32], strides = [1, 1]} : vector<1x384xf32> to vector<1x32xf32>
    %208 = vector.extract_strided_slice %198 {offsets = [0, 128], sizes = [1, 32], strides = [1, 1]} : vector<1x384xf32> to vector<1x32xf32>
    %209 = arith.addf %207, %208 : vector<1x32xf32>
    %210 = arith.negf %209 : vector<1x32xf32>
    %211 = math.exp %210 : vector<1x32xf32>
    %cst_41 = arith.constant 1.000000e+00 : f32
    %212 = vector.broadcast %cst_41 : f32 to vector<1x32xf32>
    %213 = arith.addf %212, %211 : vector<1x32xf32>
    %214 = arith.divf %212, %213 : vector<1x32xf32>
    %215 = vector.extract_strided_slice %197 {offsets = [0, 256], sizes = [1, 32], strides = [1, 1]} : vector<1x384xf32> to vector<1x32xf32>
    %216 = vector.extract_strided_slice %198 {offsets = [0, 256], sizes = [1, 32], strides = [1, 1]} : vector<1x384xf32> to vector<1x32xf32>
    %217 = arith.addf %216, %21 : vector<1x32xf32>
    %218 = arith.mulf %206, %217 : vector<1x32xf32>
    %219 = arith.addf %215, %218 : vector<1x32xf32>
    %220 = math.tanh %219 : vector<1x32xf32>
    %cst_42 = arith.constant 1.000000e+00 : f32
    %221 = vector.broadcast %cst_42 : f32 to vector<1x32xf32>
    %222 = arith.subf %221, %214 : vector<1x32xf32>
    %223 = arith.mulf %222, %220 : vector<1x32xf32>
    %224 = arith.mulf %214, %196 : vector<1x32xf32>
    %225 = arith.addf %223, %224 : vector<1x32xf32>
    %226 = vector.extract_strided_slice %19 {offsets = [7, 0], sizes = [1, 384], strides = [1, 1]} : vector<8x384xf32> to vector<1x384xf32>
    %cst_43 = arith.constant dense<0.000000e+00> : vector<1x384xf32>
    %227 = tpu.matmul %225, %20, %cst_43 {dimension_numbers = #tpu.dot_dimension_numbers<[1], [0], [0], [1], [0, 0, 1, 1], [], []>} : vector<1x32xf32>, vector<32x384xf32>, vector<1x384xf32> -> vector<1x384xf32>
    %228 = vector.extract_strided_slice %226 {offsets = [0, 0], sizes = [1, 32], strides = [1, 1]} : vector<1x384xf32> to vector<1x32xf32>
    %229 = vector.extract_strided_slice %227 {offsets = [0, 0], sizes = [1, 32], strides = [1, 1]} : vector<1x384xf32> to vector<1x32xf32>
    %230 = arith.addf %228, %229 : vector<1x32xf32>
    %231 = arith.negf %230 : vector<1x32xf32>
    %232 = math.exp %231 : vector<1x32xf32>
    %cst_44 = arith.constant 1.000000e+00 : f32
    %233 = vector.broadcast %cst_44 : f32 to vector<1x32xf32>
    %234 = arith.addf %233, %232 : vector<1x32xf32>
    %235 = arith.divf %233, %234 : vector<1x32xf32>
    %236 = vector.extract_strided_slice %226 {offsets = [0, 128], sizes = [1, 32], strides = [1, 1]} : vector<1x384xf32> to vector<1x32xf32>
    %237 = vector.extract_strided_slice %227 {offsets = [0, 128], sizes = [1, 32], strides = [1, 1]} : vector<1x384xf32> to vector<1x32xf32>
    %238 = arith.addf %236, %237 : vector<1x32xf32>
    %239 = arith.negf %238 : vector<1x32xf32>
    %240 = math.exp %239 : vector<1x32xf32>
    %cst_45 = arith.constant 1.000000e+00 : f32
    %241 = vector.broadcast %cst_45 : f32 to vector<1x32xf32>
    %242 = arith.addf %241, %240 : vector<1x32xf32>
    %243 = arith.divf %241, %242 : vector<1x32xf32>
    %244 = vector.extract_strided_slice %226 {offsets = [0, 256], sizes = [1, 32], strides = [1, 1]} : vector<1x384xf32> to vector<1x32xf32>
    %245 = vector.extract_strided_slice %227 {offsets = [0, 256], sizes = [1, 32], strides = [1, 1]} : vector<1x384xf32> to vector<1x32xf32>
    %246 = arith.addf %245, %21 : vector<1x32xf32>
    %247 = arith.mulf %235, %246 : vector<1x32xf32>
    %248 = arith.addf %244, %247 : vector<1x32xf32>
    %249 = math.tanh %248 : vector<1x32xf32>
    %cst_46 = arith.constant 1.000000e+00 : f32
    %250 = vector.broadcast %cst_46 : f32 to vector<1x32xf32>
    %251 = arith.subf %250, %243 : vector<1x32xf32>
    %252 = arith.mulf %251, %249 : vector<1x32xf32>
    %253 = arith.mulf %243, %225 : vector<1x32xf32>
    %254 = arith.addf %252, %253 : vector<1x32xf32>
    %255 = tpu.concatenate %51, %80, %109, %138, %167, %196, %225, %254 in 0 : vector<1x32xf32>, vector<1x32xf32>, vector<1x32xf32>, vector<1x32xf32>, vector<1x32xf32>, vector<1x32xf32>, vector<1x32xf32>, vector<1x32xf32> -> vector<8x32xf32>
    %cst_47 = arith.constant 0.000000e+00 : f32
    %256 = vector.broadcast %cst_47 : f32 to vector<8x32xf32>
    %257 = arith.cmpf ogt, %255, %256 : vector<8x32xf32>
    %cst_48 = arith.constant 0.000000e+00 : f32
    %258 = vector.broadcast %cst_48 : f32 to vector<8x32xf32>
    %259 = arith.minimumf %255, %258 : vector<8x32xf32>
    %260 = math.exp %259 : vector<8x32xf32>
    %cst_49 = arith.constant 1.000000e+00 : f32
    %261 = vector.broadcast %cst_49 : f32 to vector<8x32xf32>
    %262 = arith.subf %260, %261 : vector<8x32xf32>
    %cst_50 = arith.constant 1.67326319 : f32
    %263 = vector.broadcast %cst_50 : f32 to vector<8x32xf32>
    %264 = arith.mulf %263, %262 : vector<8x32xf32>
    %265 = arith.select %257, %255, %264 : vector<8x32xi1>, vector<8x32xf32>
    %cst_51 = arith.constant 1.05070102 : f32
    %266 = vector.broadcast %cst_51 : f32 to vector<8x32xf32>
    %267 = arith.mulf %266, %265 : vector<8x32xf32>
    %c0_52 = arith.constant 0 : index
    %c0_53 = arith.constant 0 : index
    %268 = vector.load %arg7[%c0_52, %c0_53] : memref<32x128xf32, #tpu.memory_space<vmem>>, vector<32x128xf32>
    %cst_54 = arith.constant dense<0.000000e+00> : vector<8x128xf32>
    %269 = tpu.matmul %267, %268, %cst_54 {dimension_numbers = #tpu.dot_dimension_numbers<[1], [0], [0], [1], [0, 0, 1, 1], [], []>} : vector<8x32xf32>, vector<32x128xf32>, vector<8x128xf32> -> vector<8x128xf32>
    %c0_55 = arith.constant 0 : index
    %c0_56 = arith.constant 0 : index
    %270 = vector.load %arg8[%c0_55, %c0_56] : memref<1x128xf32, #tpu.memory_space<vmem>>, vector<1x128xf32>
    %271 = vector.broadcast %270 : vector<1x128xf32> to vector<8x128xf32>
    %272 = arith.addf %269, %271 : vector<8x128xf32>
    %cst_57 = arith.constant dense<0xFF800000> : vector<8xf32>
    %273 = vector.multi_reduction <maximumf>, %272, %cst_57 [1] : vector<8x128xf32> to vector<8xf32>
    %274 = vector.shape_cast %273 : vector<8xf32> to vector<8x1xf32>
    %275 = vector.broadcast %274 : vector<8x1xf32> to vector<8x128xf32>
    %276 = arith.subf %272, %275 : vector<8x128xf32>
    %277 = math.exp %276 : vector<8x128xf32>
    %cst_58 = arith.constant dense<0.000000e+00> : vector<8xf32>
    %278 = vector.multi_reduction <add>, %277, %cst_58 [1] : vector<8x128xf32> to vector<8xf32>
    %279 = vector.shape_cast %278 : vector<8xf32> to vector<8x1xf32>
    %280 = math.log %279 : vector<8x1xf32>
    %281 = vector.broadcast %280 : vector<8x1xf32> to vector<8x128xf32>
    %282 = arith.subf %276, %281 : vector<8x128xf32>
    %c0_59 = arith.constant 0 : index
    %c0_60 = arith.constant 0 : index
    %283 = vector.load %arg9[%c0_59, %c0_60] : memref<8x128xf32, #tpu.memory_space<vmem>>, vector<8x128xf32>
    tpu.vector_store %arg9[%c0_59, %c0_60], %282 {strides = array<i32>} : memref<8x128xf32, #tpu.memory_space<vmem>>, vector<8x128xf32>,
    return
  }
}

</mosaic_0001>

<llo_original>
// kernel: tpu_custom_call.1
$region0: #{tpu_custom_call.1}
  #allocation0 [shape = 'u32[]', space=smem, size = 0x4, offset = 0x4, fixed_abs, tag = 'smem constant byte address 0x4 - core index']
  #allocation1 [shape = 'u32[72,128]{1,0:T(1,128)}', space=vmem, size = 0x9000, scoped, tag = 'internal scratch']
  %s0 = inlined_call_operand.vmem [shape: s32[8,1], index: 0, kind: input, shape index: {}]
  %s1 = inlined_call_operand.vmem [shape: s32[8,1], index: 1, kind: input, shape index: {}]
  %s2 = inlined_call_operand.hbm [shape: f32[128,384], index: 2, kind: input, shape index: {}]
  %s3 = inlined_call_operand.hbm [shape: f32[32,384], index: 3, kind: input, shape index: {}]
  %s4 = inlined_call_operand.hbm [shape: f32[32,384], index: 4, kind: input, shape index: {}]
  %s5 = inlined_call_operand.vmem [shape: f32[1,384], index: 5, kind: input, shape index: {}]
  %s6 = inlined_call_operand.vmem [shape: f32[1,32], index: 6, kind: input, shape index: {}]
  %s7 = inlined_call_operand.hbm [shape: f32[32,128], index: 7, kind: input, shape index: {}]
  %s8 = inlined_call_operand.vmem [shape: f32[1,128], index: 8, kind: input, shape index: {}]
  %s9 = inlined_call_operand.hbm [shape: f32[8,128], index: 9, kind: output, shape index: {}]
  %s10 = sld [smem:[#allocation0]]
  $region62: #{tpu_custom_call.1} parent=0
    _
  %s12 = ssub.s32 1, %s10
  %s13 = scalar_select 0, %s12, %s10
  $region1: #{tpu_custom_call.1} parent=0
    #allocation2 [shape = 'u8[196608]{0}', space=vmem, size = 0x30000, scoped, tag = 'input window, operand 2, single buffered']
    #allocation3 [shape = 's32[1]{0}', space=sflag, size = 0x4, scoped, tag = 'scoped memory for tpu_custom_call.1']
    #allocation4 [shape = 's32[1]{0}', space=sflag, size = 0x4, scoped, tag = 'scoped memory for tpu_custom_call.1']
    #allocation5 [shape = 'u8[49152]{0}', space=vmem, size = 0xc000, scoped, tag = 'input window, operand 3, single buffered']
    #allocation6 [shape = 's32[1]{0}', space=sflag, size = 0x4, scoped, tag = 'scoped memory for tpu_custom_call.1']
    #allocation7 [shape = 'u8[49152]{0}', space=vmem, size = 0xc000, scoped, tag = 'input window, operand 4, single buffered']
    #allocation8 [shape = 'u8[16384]{0}', space=vmem, size = 0x4000, scoped, tag = 'input window, operand 7, single buffered']
    #allocation9 [shape = 's32[1]{0}', space=sflag, size = 0x4, scoped, tag = 'scoped memory for tpu_custom_call.1']
    #allocation10 [shape = 'u8[4096]{0}', space=vmem, size = 0x1000, scoped, tag = 'output window, operand 0, single buffered']
    %14 = vsyncpa [#allocation3], 0
    %15 = vsyncpa [#allocation6], 0
    %16 = vsyncpa [#allocation9], 0
    %17 = vsyncpa [#allocation4], 0
    // Predicated region
    $region2: #{tpu_custom_call.1} parent=1 // pred_check
      _
    $region3: #{tpu_custom_call.1} parent=1 // pred_check_branch
      %19 = sbr.rel (0) target = $region5
    $region4: #{tpu_custom_call.1} parent=1 // pred_region
      _
    $region5: #{tpu_custom_call.1} parent=1 // pred_fallthru
      _
    // Predicated region
    $region6: #{tpu_custom_call.1} parent=1 // pred_check
      _
    $region7: #{tpu_custom_call.1} parent=1 // pred_check_branch
      %21 = sbr.rel (0) target = $region9
    $region8: #{tpu_custom_call.1} parent=1 // pred_region
      _
    $region9: #{tpu_custom_call.1} parent=1 // pred_fallthru
      _
    // Predicated region
    $region10: #{tpu_custom_call.1} parent=1 // pred_check
      _
    $region11: #{tpu_custom_call.1} parent=1 // pred_check_branch
      %23 = sbr.rel (0) target = $region13
    $region12: #{tpu_custom_call.1} parent=1 // pred_region
      %25 = vsyncadd [#allocation3], 0
      %s26 = sshll.u32 %s2, 4
      %s27 = int_to_ptr.hbm [resolvable:$true] %s26
      %s28 = sshll.u32 [#allocation2], 4
      %s29 = int_to_ptr.vmem [resolvable:$true] %s28
      %34 = dma.hbm_to_vmem [thread:$0]  %s27, 6144, %s29, [#allocation3], 384, 384, 24
    $region13: #{tpu_custom_call.1} parent=1 // pred_fallthru
      _
    // Predicated region
    $region14: #{tpu_custom_call.1} parent=1 // pred_check
      _
    $region15: #{tpu_custom_call.1} parent=1 // pred_check_branch
      %36 = sbr.rel (0) target = $region17
    $region16: #{tpu_custom_call.1} parent=1 // pred_region
      %38 = vsyncadd [#allocation6], 0
      %s39 = sshll.u32 %s3, 4
      %s40 = int_to_ptr.hbm [resolvable:$true] %s39
      %s41 = sshll.u32 [#allocation5], 4
      %s42 = int_to_ptr.vmem [resolvable:$true] %s41
      %47 = dma.hbm_to_vmem [thread:$0]  %s40, 1536, %s42, [#allocation6], 384, 384, 24
    $region17: #{tpu_custom_call.1} parent=1 // pred_fallthru
      _
    // Predicated region
    $region18: #{tpu_custom_call.1} parent=1 // pred_check
      _
    $region19: #{tpu_custom_call.1} parent=1 // pred_check_branch
      %49 = sbr.rel (0) target = $region21
    $region20: #{tpu_custom_call.1} parent=1 // pred_region
      %51 = vsyncadd [#allocation6], 0
      %s52 = sshll.u32 %s4, 4
      %s53 = int_to_ptr.hbm [resolvable:$true] %s52
      %s54 = sshll.u32 [#allocation7], 4
      %s55 = int_to_ptr.vmem [resolvable:$true] %s54
      %60 = dma.hbm_to_vmem [thread:$0]  %s53, 1536, %s55, [#allocation6], 384, 384, 24
    $region21: #{tpu_custom_call.1} parent=1 // pred_fallthru
      _
    // Predicated region
    $region22: #{tpu_custom_call.1} parent=1 // pred_check
      _
    $region23: #{tpu_custom_call.1} parent=1 // pred_check_branch
      %62 = sbr.rel (0) target = $region25
    $region24: #{tpu_custom_call.1} parent=1 // pred_region
      _
    $region25: #{tpu_custom_call.1} parent=1 // pred_fallthru
      _
    // Predicated region
    $region26: #{tpu_custom_call.1} parent=1 // pred_check
      _
    $region27: #{tpu_custom_call.1} parent=1 // pred_check_branch
      %64 = sbr.rel (0) target = $region29
    $region28: #{tpu_custom_call.1} parent=1 // pred_region
      _
    $region29: #{tpu_custom_call.1} parent=1 // pred_fallthru
      _
    // Predicated region
    $region30: #{tpu_custom_call.1} parent=1 // pred_check
      _
    $region31: #{tpu_custom_call.1} parent=1 // pred_check_branch
      %66 = sbr.rel (0) target = $region33
    $region32: #{tpu_custom_call.1} parent=1 // pred_region
      %68 = vsyncadd [#allocation9], 0
      %s69 = sshll.u32 %s7, 4
      %s70 = int_to_ptr.hbm [resolvable:$true] %s69
      %s71 = sshll.u32 [#allocation8], 4
      %s72 = int_to_ptr.vmem [resolvable:$true] %s71
      %77 = dma.hbm_to_vmem [thread:$0]  %s70, 512, %s72, [#allocation9], 128, 128, 8
    $region33: #{tpu_custom_call.1} parent=1 // pred_fallthru
      _
    // Predicated region
    $region34: #{tpu_custom_call.1} parent=1 // pred_check
      _
    $region35: #{tpu_custom_call.1} parent=1 // pred_check_branch
      %79 = sbr.rel (0) target = $region37
    $region36: #{tpu_custom_call.1} parent=1 // pred_region
      _
    $region37: #{tpu_custom_call.1} parent=1 // pred_fallthru
      _
    // Predicated region
    $region38: #{tpu_custom_call.1} parent=1 // pred_check
      _
    $region39: #{tpu_custom_call.1} parent=1 // pred_check_branch
      %81 = sbr.rel (0) target = $region41
    $region40: #{tpu_custom_call.1} parent=1 // pred_region
      %83 = dma.done [#allocation3], 6144
    $region41: #{tpu_custom_call.1} parent=1 // pred_fallthru
      _
    // Predicated region
    $region42: #{tpu_custom_call.1} parent=1 // pred_check
      _
    $region43: #{tpu_custom_call.1} parent=1 // pred_check_branch
      %85 = sbr.rel (0) target = $region45
    $region44: #{tpu_custom_call.1} parent=1 // pred_region
      %87 = dma.done [#allocation6], 1536
    $region45: #{tpu_custom_call.1} parent=1 // pred_fallthru
      _
    // Predicated region
    $region46: #{tpu_custom_call.1} parent=1 // pred_check
      _
    $region47: #{tpu_custom_call.1} parent=1 // pred_check_branch
      %89 = sbr.rel (0) target = $region49
    $region48: #{tpu_custom_call.1} parent=1 // pred_region
      %91 = dma.done [#allocation6], 1536
    $region49: #{tpu_custom_call.1} parent=1 // pred_fallthru
      _
    // Predicated region
    $region50: #{tpu_custom_call.1} parent=1 // pred_check
      _
    $region51: #{tpu_custom_call.1} parent=1 // pred_check_branch
      %93 = sbr.rel (0) target = $region53
    $region52: #{tpu_custom_call.1} parent=1 // pred_region
      %95 = dma.done [#allocation9], 512
    $region53: #{tpu_custom_call.1} parent=1 // pred_fallthru
      _
    %v96 = vld [vmem:[%s0] sm:$0xff]
    %v97 = vld [vmem:[%s1] sm:$0xff]
    %v98 = vlaneseq
    %v99 = vand.u32 %v98, 127
    %100 = vset.pattern.permute.xlu0 0
    %101 = vperm.xlu0 %100, %v96
    %v102 = vpop.permute.xlu0 %101
    %vm103 = vcmp.eq.s32.totalorder %v99, %v102
    %v104 = vsel %vm103, 1, 0
    %v105 = vcvt.s32.f32 %v104
    %106 = vset.pattern.permute.xlu0 0
    %107 = vperm.xlu0 %106, %v97
    %v108 = vpop.permute.xlu0 %107
    %vm109 = vcmp.eq.s32.totalorder %v99, %v108
    %v110 = vsel %vm109, 1, 0
    %v111 = vcvt.s32.f32 %v110
    %v112 = vld [vmem:[#allocation2] sm:$0xff]
    %v113 = vld [vmem:[#allocation2 + $0x8] sm:$0xff]
    %v114 = vld [vmem:[#allocation2 + $0x10] sm:$0xff]
    %v115 = vld [vmem:[#allocation2 + $0x18] sm:$0xff]
    %v116 = vld [vmem:[#allocation2 + $0x20] sm:$0xff]
    %v117 = vld [vmem:[#allocation2 + $0x28] sm:$0xff]
    %v118 = vld [vmem:[#allocation2 + $0x30] sm:$0xff]
    %v119 = vld [vmem:[#allocation2 + $0x38] sm:$0xff]
    %v120 = vld [vmem:[#allocation2 + $0x40] sm:$0xff]
    %v121 = vld [vmem:[#allocation2 + $0x48] sm:$0xff]
    %v122 = vld [vmem:[#allocation2 + $0x50] sm:$0xff]
    %v123 = vld [vmem:[#allocation2 + $0x58] sm:$0xff]
    %v124 = vld [vmem:[#allocation2 + $0x60] sm:$0xff]
    %v125 = vld [vmem:[#allocation2 + $0x68] sm:$0xff]
    %v126 = vld [vmem:[#allocation2 + $0x70] sm:$0xff]
    %v127 = vld [vmem:[#allocation2 + $0x78] sm:$0xff]
    %v128 = vld [vmem:[#allocation2 + $0x80] sm:$0xff]
    %v129 = vld [vmem:[#allocation2 + $0x88] sm:$0xff]
    %v130 = vld [vmem:[#allocation2 + $0x90] sm:$0xff]
    %v131 = vld [vmem:[#allocation2 + $0x98] sm:$0xff]
    %v132 = vld [vmem:[#allocation2 + $0xa0] sm:$0xff]
    %v133 = vld [vmem:[#allocation2 + $0xa8] sm:$0xff]
    %v134 = vld [vmem:[#allocation2 + $0xb0] sm:$0xff]
    %v135 = vld [vmem:[#allocation2 + $0xb8] sm:$0xff]
    %v136 = vld [vmem:[#allocation2 + $0xc0] sm:$0xff]
    %v137 = vld [vmem:[#allocation2 + $0xc8] sm:$0xff]
    %v138 = vld [vmem:[#allocation2 + $0xd0] sm:$0xff]
    %v139 = vld [vmem:[#allocation2 + $0xd8] sm:$0xff]
    %v140 = vld [vmem:[#allocation2 + $0xe0] sm:$0xff]
    %v141 = vld [vmem:[#allocation2 + $0xe8] sm:$0xff]
    %v142 = vld [vmem:[#allocation2 + $0xf0] sm:$0xff]
    %v143 = vld [vmem:[#allocation2 + $0xf8] sm:$0xff]
    %v144 = vld [vmem:[#allocation2 + $0x100] sm:$0xff]
    %v145 = vld [vmem:[#allocation2 + $0x108] sm:$0xff]
    %v146 = vld [vmem:[#allocation2 + $0x110] sm:$0xff]
    %v147 = vld [vmem:[#allocation2 + $0x118] sm:$0xff]
    %v148 = vld [vmem:[#allocation2 + $0x120] sm:$0xff]
    %v149 = vld [vmem:[#allocation2 + $0x128] sm:$0xff]
    %v150 = vld [vmem:[#allocation2 + $0x130] sm:$0xff]
    %v151 = vld [vmem:[#allocation2 + $0x138] sm:$0xff]
    %v152 = vld [vmem:[#allocation2 + $0x140] sm:$0xff]
    %v153 = vld [vmem:[#allocation2 + $0x148] sm:$0xff]
    %v154 = vld [vmem:[#allocation2 + $0x150] sm:$0xff]
    %v155 = vld [vmem:[#allocation2 + $0x158] sm:$0xff]
    %v156 = vld [vmem:[#allocation2 + $0x160] sm:$0xff]
    %v157 = vld [vmem:[#allocation2 + $0x168] sm:$0xff]
    %v158 = vld [vmem:[#allocation2 + $0x170] sm:$0xff]
    %v159 = vld [vmem:[#allocation2 + $0x178] sm:$0xff]
    %v160 = vld [vmem:[#allocation5] sm:$0xff]
    %v161 = vld [vmem:[#allocation5 + $0x8] sm:$0xff]
    %v162 = vld [vmem:[#allocation5 + $0x10] sm:$0xff]
    %v163 = vld [vmem:[#allocation5 + $0x18] sm:$0xff]
    %v164 = vld [vmem:[#allocation5 + $0x20] sm:$0xff]
    %v165 = vld [vmem:[#allocation5 + $0x28] sm:$0xff]
    %v166 = vld [vmem:[#allocation5 + $0x30] sm:$0xff]
    %v167 = vld [vmem:[#allocation5 + $0x38] sm:$0xff]
    %v168 = vld [vmem:[#allocation5 + $0x40] sm:$0xff]
    %v169 = vld [vmem:[#allocation5 + $0x48] sm:$0xff]
    %v170 = vld [vmem:[#allocation5 + $0x50] sm:$0xff]
    %v171 = vld [vmem:[#allocation5 + $0x58] sm:$0xff]
    %vm172 = vcmask 261120
    %v174 = vsel %vm172, %v111, 0
    %176 = vmatpush.msra.mxu0 0.0
    %177 = vmatpush.msra.mxu0 0.0
    %178 = vmatpush.msra.mxu0 0.0
    %179 = vmatpush.msra.mxu0 0.0
    %180 = vmatpush.msra.mxu0 0.0
    %181 = vmatpush.msra.mxu0 0.0
    %182 = vmatpush.msra.mxu0 0.0
    %183 = vmatpush.msra.mxu0 0.0
    %184 = vmatpush.msra.mxu0 0.0
    %185 = vmatpush.msra.mxu0 0.0
    %186 = vmatpush.msra.mxu0 0.0
    %187 = vmatpush.msra.mxu0 0.0
    %188 = vmatpush.msra.mxu0 %v169
    %189 = vmatpush.msra.mxu0 %v166
    %190 = vmatpush.msra.mxu0 %v163
    %191 = vmatpush.msra.mxu0 %v160
    %192 = vmatmul.f32.gmra.mxu0 %v174
    %v193 = vpop.f32.mrf.mxu0
    %v194 = vadd.f32 0.0, %v193
    %195 = vdwg.mxu0
    %196 = vmatpush.msra.mxu0 0.0
    %197 = vmatpush.msra.mxu0 0.0
    %198 = vmatpush.msra.mxu0 0.0
    %199 = vmatpush.msra.mxu0 0.0
    %200 = vmatpush.msra.mxu0 0.0
    %201 = vmatpush.msra.mxu0 0.0
    %202 = vmatpush.msra.mxu0 0.0
    %203 = vmatpush.msra.mxu0 0.0
    %204 = vmatpush.msra.mxu0 0.0
    %205 = vmatpush.msra.mxu0 0.0
    %206 = vmatpush.msra.mxu0 0.0
    %207 = vmatpush.msra.mxu0 0.0
    %208 = vmatpush.msra.mxu0 %v170
    %209 = vmatpush.msra.mxu0 %v167
    %210 = vmatpush.msra.mxu0 %v164
    %211 = vmatpush.msra.mxu0 %v161
    %212 = vmatmul.f32.gmra.mxu0 %v174
    %v213 = vpop.f32.mrf.mxu0
    %v214 = vadd.f32 0.0, %v213
    %215 = vdwg.mxu0
    %216 = vmatpush.msra.mxu0 0.0
    %217 = vmatpush.msra.mxu0 0.0
    %218 = vmatpush.msra.mxu0 0.0
    %219 = vmatpush.msra.mxu0 0.0
    %220 = vmatpush.msra.mxu0 0.0
    %221 = vmatpush.msra.mxu0 0.0
    %222 = vmatpush.msra.mxu0 0.0
    %223 = vmatpush.msra.mxu0 0.0
    %224 = vmatpush.msra.mxu0 0.0
    %225 = vmatpush.msra.mxu0 0.0
    %226 = vmatpush.msra.mxu0 0.0
    %227 = vmatpush.msra.mxu0 0.0
    %228 = vmatpush.msra.mxu0 %v171
    %229 = vmatpush.msra.mxu0 %v168
    %230 = vmatpush.msra.mxu0 %v165
    %231 = vmatpush.msra.mxu0 %v162
    %232 = vmatmul.f32.gmra.mxu0 %v174
    %v233 = vpop.f32.mrf.mxu0
    %v234 = vadd.f32 0.0, %v233
    %235 = vdwg.mxu0
    %236 = vmatpush.msra.mxu0 %v157
    %237 = vmatpush.msra.mxu0 %v154
    %238 = vmatpush.msra.mxu0 %v151
    %239 = vmatpush.msra.mxu0 %v148
    %240 = vmatpush.msra.mxu0 %v145
    %241 = vmatpush.msra.mxu0 %v142
    %242 = vmatpush.msra.mxu0 %v139
    %243 = vmatpush.msra.mxu0 %v136
    %244 = vmatpush.msra.mxu0 %v133
    %245 = vmatpush.msra.mxu0 %v130
    %246 = vmatpush.msra.mxu0 %v127
    %247 = vmatpush.msra.mxu0 %v124
    %248 = vmatpush.msra.mxu0 %v121
    %249 = vmatpush.msra.mxu0 %v118
    %250 = vmatpush.msra.mxu0 %v115
    %251 = vmatpush.msra.mxu0 %v112
    %252 = vmatmul.f32.gmra.mxu0 %v105
    %v253 = vpop.f32.mrf.mxu0
    %v254 = vadd.f32 %v194, %v253
    %255 = vdwg.mxu0
    %256 = vmatpush.msra.mxu0 %v158
    %257 = vmatpush.msra.mxu0 %v155
    %258 = vmatpush.msra.mxu0 %v152
    %259 = vmatpush.msra.mxu0 %v149
    %260 = vmatpush.msra.mxu0 %v146
    %261 = vmatpush.msra.mxu0 %v143
    %262 = vmatpush.msra.mxu0 %v140
    %263 = vmatpush.msra.mxu0 %v137
    %264 = vmatpush.msra.mxu0 %v134
    %265 = vmatpush.msra.mxu0 %v131
    %266 = vmatpush.msra.mxu0 %v128
    %267 = vmatpush.msra.mxu0 %v125
    %268 = vmatpush.msra.mxu0 %v122
    %269 = vmatpush.msra.mxu0 %v119
    %270 = vmatpush.msra.mxu0 %v116
    %271 = vmatpush.msra.mxu0 %v113
    %272 = vmatmul.f32.gmra.mxu0 %v105
    %v273 = vpop.f32.mrf.mxu0
    %v274 = vadd.f32 %v214, %v273
    %275 = vdwg.mxu0
    %276 = vmatpush.msra.mxu0 %v159
    %277 = vmatpush.msra.mxu0 %v156
    %278 = vmatpush.msra.mxu0 %v153
    %279 = vmatpush.msra.mxu0 %v150
    %280 = vmatpush.msra.mxu0 %v147
    %281 = vmatpush.msra.mxu0 %v144
    %282 = vmatpush.msra.mxu0 %v141
    %283 = vmatpush.msra.mxu0 %v138
    %284 = vmatpush.msra.mxu0 %v135
    %285 = vmatpush.msra.mxu0 %v132
    %286 = vmatpush.msra.mxu0 %v129
    %287 = vmatpush.msra.mxu0 %v126
    %288 = vmatpush.msra.mxu0 %v123
    %289 = vmatpush.msra.mxu0 %v120
    %290 = vmatpush.msra.mxu0 %v117
    %291 = vmatpush.msra.mxu0 %v114
    %292 = vmatmul.f32.gmra.mxu0 %v105
    %v293 = vpop.f32.mrf.mxu0
    %v294 = vadd.f32 %v234, %v293
    %295 = vdwg.mxu0
    %v296 = vld [vmem:[%s5] sm:$0x7]
    %v298 = vperm.slane %v296, 0
    %v299 = vperm.slane %v296, 1
    %v300 = vperm.slane %v296, 2
    %v304 = vadd.f32 %v254, %v298
    %v305 = vadd.f32 %v274, %v299
    %v306 = vadd.f32 %v294, %v300
    %v307 = vld [vmem:[#allocation7] sm:$0xff]
    %v308 = vld [vmem:[#allocation7 + $0x8] sm:$0xff]
    %v309 = vld [vmem:[#allocation7 + $0x10] sm:$0xff]
    %v310 = vld [vmem:[#allocation7 + $0x18] sm:$0xff]
    %v311 = vld [vmem:[#allocation7 + $0x20] sm:$0xff]
    %v312 = vld [vmem:[#allocation7 + $0x28] sm:$0xff]
    %v313 = vld [vmem:[#allocation7 + $0x30] sm:$0xff]
    %v314 = vld [vmem:[#allocation7 + $0x38] sm:$0xff]
    %v315 = vld [vmem:[#allocation7 + $0x40] sm:$0xff]
    %v316 = vld [vmem:[#allocation7 + $0x48] sm:$0xff]
    %v317 = vld [vmem:[#allocation7 + $0x50] sm:$0xff]
    %v318 = vld [vmem:[#allocation7 + $0x58] sm:$0xff]
    %v319 = vld [vmem:[%s6] sm:$0x1]
    %v321 = vsel %vm172, 0.0, 0
    %323 = vmatpush.msra.mxu0 0.0
    %324 = vmatpush.msra.mxu0 0.0
    %325 = vmatpush.msra.mxu0 0.0
    %326 = vmatpush.msra.mxu0 0.0
    %327 = vmatpush.msra.mxu0 0.0
    %328 = vmatpush.msra.mxu0 0.0
    %329 = vmatpush.msra.mxu0 0.0
    %330 = vmatpush.msra.mxu0 0.0
    %331 = vmatpush.msra.mxu0 0.0
    %332 = vmatpush.msra.mxu0 0.0
    %333 = vmatpush.msra.mxu0 0.0
    %334 = vmatpush.msra.mxu0 0.0
    %335 = vmatpush.msra.mxu0 %v316
    %336 = vmatpush.msra.mxu0 %v313
    %337 = vmatpush.msra.mxu0 %v310
    %338 = vmatpush.msra.mxu0 %v307
    %339 = vmatmul.f32.gmra.mxu0 %v321
    %v340 = vpop.f32.mrf.mxu0
    %v341 = vadd.f32 0.0, %v340
    %342 = vdwg.mxu0
    %343 = vmatpush.msra.mxu0 0.0
    %344 = vmatpush.msra.mxu0 0.0
    %345 = vmatpush.msra.mxu0 0.0
    %346 = vmatpush.msra.mxu0 0.0
    %347 = vmatpush.msra.mxu0 0.0
    %348 = vmatpush.msra.mxu0 0.0
    %349 = vmatpush.msra.mxu0 0.0
    %350 = vmatpush.msra.mxu0 0.0
    %351 = vmatpush.msra.mxu0 0.0
    %352 = vmatpush.msra.mxu0 0.0
    %353 = vmatpush.msra.mxu0 0.0
    %354 = vmatpush.msra.mxu0 0.0
    %355 = vmatpush.msra.mxu0 %v317
    %356 = vmatpush.msra.mxu0 %v314
    %357 = vmatpush.msra.mxu0 %v311
    %358 = vmatpush.msra.mxu0 %v308
    %359 = vmatmul.f32.gmra.mxu0 %v321
    %v360 = vpop.f32.mrf.mxu0
    %v361 = vadd.f32 0.0, %v360
    %362 = vdwg.mxu0
    %363 = vmatpush.msra.mxu0 0.0
    %364 = vmatpush.msra.mxu0 0.0
    %365 = vmatpush.msra.mxu0 0.0
    %366 = vmatpush.msra.mxu0 0.0
    %367 = vmatpush.msra.mxu0 0.0
    %368 = vmatpush.msra.mxu0 0.0
    %369 = vmatpush.msra.mxu0 0.0
    %370 = vmatpush.msra.mxu0 0.0
    %371 = vmatpush.msra.mxu0 0.0
    %372 = vmatpush.msra.mxu0 0.0
    %373 = vmatpush.msra.mxu0 0.0
    %374 = vmatpush.msra.mxu0 0.0
    %375 = vmatpush.msra.mxu0 %v318
    %376 = vmatpush.msra.mxu0 %v315
    %377 = vmatpush.msra.mxu0 %v312
    %378 = vmatpush.msra.mxu0 %v309
    %379 = vmatmul.f32.gmra.mxu0 %v321
    %v380 = vpop.f32.mrf.mxu0
    %v381 = vadd.f32 0.0, %v380
    %382 = vdwg.mxu0
    %v383 = vadd.f32 %v304, %v341
    %v384 = vxor.u32 %v383, 2147483648
    %v385 = vmul.f32 %v384, 1.442695
    %v386 = vpow.pop %v385
    %v387 = vadd.f32 %v386, 1.0
    %v388 = vrcp.pop %v387
    %v389 = vmul.f32 %v387, %v388
    %v390 = vsub.f32 1.0, %v389
    %v391 = vmul.f32 %v388, %v390
    %v392 = vadd.f32 %v388, %v391
    %vm393 = vweird.f32 %v387
    %vm394 = vweird.f32 %v388
    %vm395 = vmor %vm393, %vm394
    %v396 = vsel %vm395, %v388, %v392
    %v397 = vand.u32 2147483647, %v387
    %vm398 = vcmp.eq.f32.partialorder %v397, 8.507059e+37
    %v399 = vand.u32 %v387, 2147483648
    %v400 = vor.u32 1.1754944e-38, %v399
    %v401 = vsel %vm398, %v400, %v396
    %v402 = vmul.f32 1.0, %v401
    %v403 = vadd.f32 %v305, %v361
    %v404 = vxor.u32 %v403, 2147483648
    %v405 = vmul.f32 %v404, 1.442695
    %v406 = vpow.pop %v405
    %v407 = vadd.f32 %v406, 1.0
    %v408 = vrcp.pop %v407
    %v409 = vmul.f32 %v407, %v408
    %v410 = vsub.f32 1.0, %v409
    %v411 = vmul.f32 %v408, %v410
    %v412 = vadd.f32 %v408, %v411
    %vm413 = vweird.f32 %v407
    %vm414 = vweird.f32 %v408
    %vm415 = vmor %vm413, %vm414
    %v416 = vsel %vm415, %v408, %v412
    %v417 = vand.u32 2147483647, %v407
    %vm418 = vcmp.eq.f32.partialorder %v417, 8.507059e+37
    %v419 = vand.u32 %v407, 2147483648
    %v420 = vor.u32 1.1754944e-38, %v419
    %v421 = vsel %vm418, %v420, %v416
    %v422 = vmul.f32 1.0, %v421
    %v423 = vadd.f32 %v381, %v319
    %v424 = vmul.f32 %v402, %v423
    %v425 = vadd.f32 %v306, %v424
    %v426 = vtanh.pop %v425
    %v427 = vsub.f32 1.0, %v422
    %v428 = vmul.f32 %v427, %v426
    %v429 = vmul.f32 %v422, 0.0
    %v430 = vadd.f32 %v428, %v429
    %v432 = vsel %vm172, %v430, 0
    %434 = vmatpush.msra.mxu0 0.0
    %435 = vmatpush.msra.mxu0 0.0
    %436 = vmatpush.msra.mxu0 0.0
    %437 = vmatpush.msra.mxu0 0.0
    %438 = vmatpush.msra.mxu0 0.0
    %439 = vmatpush.msra.mxu0 0.0
    %440 = vmatpush.msra.mxu0 0.0
    %441 = vmatpush.msra.mxu0 0.0
    %442 = vmatpush.msra.mxu0 0.0
    %443 = vmatpush.msra.mxu0 0.0
    %444 = vmatpush.msra.mxu0 0.0
    %445 = vmatpush.msra.mxu0 0.0
    %446 = vmatpush.msra.mxu0 %v316
    %447 = vmatpush.msra.mxu0 %v313
    %448 = vmatpush.msra.mxu0 %v310
    %449 = vmatpush.msra.mxu0 %v307
    %450 = vmatmul.f32.gmra.mxu0 %v432
    %v451 = vpop.f32.mrf.mxu0
    %v452 = vadd.f32 0.0, %v451
    %453 = vdwg.mxu0
    %454 = vmatpush.msra.mxu0 0.0
    %455 = vmatpush.msra.mxu0 0.0
    %456 = vmatpush.msra.mxu0 0.0
    %457 = vmatpush.msra.mxu0 0.0
    %458 = vmatpush.msra.mxu0 0.0
    %459 = vmatpush.msra.mxu0 0.0
    %460 = vmatpush.msra.mxu0 0.0
    %461 = vmatpush.msra.mxu0 0.0
    %462 = vmatpush.msra.mxu0 0.0
    %463 = vmatpush.msra.mxu0 0.0
    %464 = vmatpush.msra.mxu0 0.0
    %465 = vmatpush.msra.mxu0 0.0
    %466 = vmatpush.msra.mxu0 %v317
    %467 = vmatpush.msra.mxu0 %v314
    %468 = vmatpush.msra.mxu0 %v311
    %469 = vmatpush.msra.mxu0 %v308
    %470 = vmatmul.f32.gmra.mxu0 %v432
    %v471 = vpop.f32.mrf.mxu0
    %v472 = vadd.f32 0.0, %v471
    %473 = vdwg.mxu0
    %474 = vmatpush.msra.mxu0 0.0
    %475 = vmatpush.msra.mxu0 0.0
    %476 = vmatpush.msra.mxu0 0.0
    %477 = vmatpush.msra.mxu0 0.0
    %478 = vmatpush.msra.mxu0 0.0
    %479 = vmatpush.msra.mxu0 0.0
    %480 = vmatpush.msra.mxu0 0.0
    %481 = vmatpush.msra.mxu0 0.0
    %482 = vmatpush.msra.mxu0 0.0
    %483 = vmatpush.msra.mxu0 0.0
    %484 = vmatpush.msra.mxu0 0.0
    %485 = vmatpush.msra.mxu0 0.0
    %486 = vmatpush.msra.mxu0 %v318
    %487 = vmatpush.msra.mxu0 %v315
    %488 = vmatpush.msra.mxu0 %v312
    %489 = vmatpush.msra.mxu0 %v309
    %490 = vmatmul.f32.gmra.mxu0 %v432
    %v491 = vpop.f32.mrf.mxu0
    %v492 = vadd.f32 0.0, %v491
    %493 = vdwg.mxu0
    %v495 = vrot.slane %v452, 7
    %v497 = vadd.f32 %v304, %v495
    %v498 = vxor.u32 %v497, 2147483648
    %v499 = vmul.f32 %v498, 1.442695
    %v500 = vpow.pop %v499
    %v501 = vadd.f32 %v500, 1.0
    %v502 = vrcp.pop %v501
    %v503 = vmul.f32 %v501, %v502
    %v504 = vsub.f32 1.0, %v503
    %v505 = vmul.f32 %v502, %v504
    %v506 = vadd.f32 %v502, %v505
    %vm507 = vweird.f32 %v501
    %vm508 = vweird.f32 %v502
    %vm509 = vmor %vm507, %vm508
    %v510 = vsel %vm509, %v502, %v506
    %v511 = vand.u32 2147483647, %v501
    %vm512 = vcmp.eq.f32.partialorder %v511, 8.507059e+37
    %v513 = vand.u32 %v501, 2147483648
    %v514 = vor.u32 1.1754944e-38, %v513
    %v515 = vsel %vm512, %v514, %v510
    %v516 = vmul.f32 1.0, %v515
    %v518 = vrot.slane %v472, 7
    %v520 = vadd.f32 %v305, %v518
    %v521 = vxor.u32 %v520, 2147483648
    %v522 = vmul.f32 %v521, 1.442695
    %v523 = vpow.pop %v522
    %v524 = vadd.f32 %v523, 1.0
    %v525 = vrcp.pop %v524
    %v526 = vmul.f32 %v524, %v525
    %v527 = vsub.f32 1.0, %v526
    %v528 = vmul.f32 %v525, %v527
    %v529 = vadd.f32 %v525, %v528
    %vm530 = vweird.f32 %v524
    %vm531 = vweird.f32 %v525
    %vm532 = vmor %vm530, %vm531
    %v533 = vsel %vm532, %v525, %v529
    %v534 = vand.u32 2147483647, %v524
    %vm535 = vcmp.eq.f32.partialorder %v534, 8.507059e+37
    %v536 = vand.u32 %v524, 2147483648
    %v537 = vor.u32 1.1754944e-38, %v536
    %v538 = vsel %vm535, %v537, %v533
    %v539 = vmul.f32 1.0, %v538
    %v540 = vadd.f32 %v492, %v319
    %v542 = vrot.slane %v540, 7
    %v544 = vmul.f32 %v516, %v542
    %v545 = vadd.f32 %v306, %v544
    %v546 = vtanh.pop %v545
    %v547 = vsub.f32 1.0, %v539
    %v548 = vmul.f32 %v547, %v546
    %v549 = vrot.slane %v430, 7
    %v551 = vmul.f32 %v539, %v549
    %v552 = vadd.f32 %v548, %v551
    %v554 = vrot.slane %v552, 1
    %v555 = vsel %vm172, %v554, 0
    %557 = vmatpush.msra.mxu0 0.0
    %558 = vmatpush.msra.mxu0 0.0
    %559 = vmatpush.msra.mxu0 0.0
    %560 = vmatpush.msra.mxu0 0.0
    %561 = vmatpush.msra.mxu0 0.0
    %562 = vmatpush.msra.mxu0 0.0
    %563 = vmatpush.msra.mxu0 0.0
    %564 = vmatpush.msra.mxu0 0.0
    %565 = vmatpush.msra.mxu0 0.0
    %566 = vmatpush.msra.mxu0 0.0
    %567 = vmatpush.msra.mxu0 0.0
    %568 = vmatpush.msra.mxu0 0.0
    %569 = vmatpush.msra.mxu0 %v316
    %570 = vmatpush.msra.mxu0 %v313
    %571 = vmatpush.msra.mxu0 %v310
    %572 = vmatpush.msra.mxu0 %v307
    %573 = vmatmul.f32.gmra.mxu0 %v555
    %v574 = vpop.f32.mrf.mxu0
    %v575 = vadd.f32 0.0, %v574
    %576 = vdwg.mxu0
    %577 = vmatpush.msra.mxu0 0.0
    %578 = vmatpush.msra.mxu0 0.0
    %579 = vmatpush.msra.mxu0 0.0
    %580 = vmatpush.msra.mxu0 0.0
    %581 = vmatpush.msra.mxu0 0.0
    %582 = vmatpush.msra.mxu0 0.0
    %583 = vmatpush.msra.mxu0 0.0
    %584 = vmatpush.msra.mxu0 0.0
    %585 = vmatpush.msra.mxu0 0.0
    %586 = vmatpush.msra.mxu0 0.0
    %587 = vmatpush.msra.mxu0 0.0
    %588 = vmatpush.msra.mxu0 0.0
    %589 = vmatpush.msra.mxu0 %v317
    %590 = vmatpush.msra.mxu0 %v314
    %591 = vmatpush.msra.mxu0 %v311
    %592 = vmatpush.msra.mxu0 %v308
    %593 = vmatmul.f32.gmra.mxu0 %v555
    %v594 = vpop.f32.mrf.mxu0
    %v595 = vadd.f32 0.0, %v594
    %596 = vdwg.mxu0
    %597 = vmatpush.msra.mxu0 0.0
    %598 = vmatpush.msra.mxu0 0.0
    %599 = vmatpush.msra.mxu0 0.0
    %600 = vmatpush.msra.mxu0 0.0
    %601 = vmatpush.msra.mxu0 0.0
    %602 = vmatpush.msra.mxu0 0.0
    %603 = vmatpush.msra.mxu0 0.0
    %604 = vmatpush.msra.mxu0 0.0
    %605 = vmatpush.msra.mxu0 0.0
    %606 = vmatpush.msra.mxu0 0.0
    %607 = vmatpush.msra.mxu0 0.0
    %608 = vmatpush.msra.mxu0 0.0
    %609 = vmatpush.msra.mxu0 %v318
    %610 = vmatpush.msra.mxu0 %v315
    %611 = vmatpush.msra.mxu0 %v312
    %612 = vmatpush.msra.mxu0 %v309
    %613 = vmatmul.f32.gmra.mxu0 %v555
    %v614 = vpop.f32.mrf.mxu0
    %v615 = vadd.f32 0.0, %v614
    %616 = vdwg.mxu0
    %v618 = vrot.slane %v575, 6
    %v620 = vadd.f32 %v304, %v618
    %v621 = vxor.u32 %v620, 2147483648
    %v622 = vmul.f32 %v621, 1.442695
    %v623 = vpow.pop %v622
    %v624 = vadd.f32 %v623, 1.0
    %v625 = vrcp.pop %v624
    %v626 = vmul.f32 %v624, %v625
    %v627 = vsub.f32 1.0, %v626
    %v628 = vmul.f32 %v625, %v627
    %v629 = vadd.f32 %v625, %v628
    %vm630 = vweird.f32 %v624
    %vm631 = vweird.f32 %v625
    %vm632 = vmor %vm630, %vm631
    %v633 = vsel %vm632, %v625, %v629
    %v634 = vand.u32 2147483647, %v624
    %vm635 = vcmp.eq.f32.partialorder %v634, 8.507059e+37
    %v636 = vand.u32 %v624, 2147483648
    %v637 = vor.u32 1.1754944e-38, %v636
    %v638 = vsel %vm635, %v637, %v633
    %v639 = vmul.f32 1.0, %v638
    %v641 = vrot.slane %v595, 6
    %v643 = vadd.f32 %v305, %v641
    %v644 = vxor.u32 %v643, 2147483648
    %v645 = vmul.f32 %v644, 1.442695
    %v646 = vpow.pop %v645
    %v647 = vadd.f32 %v646, 1.0
    %v648 = vrcp.pop %v647
    %v649 = vmul.f32 %v647, %v648
    %v650 = vsub.f32 1.0, %v649
    %v651 = vmul.f32 %v648, %v650
    %v652 = vadd.f32 %v648, %v651
    %vm653 = vweird.f32 %v647
    %vm654 = vweird.f32 %v648
    %vm655 = vmor %vm653, %vm654
    %v656 = vsel %vm655, %v648, %v652
    %v657 = vand.u32 2147483647, %v647
    %vm658 = vcmp.eq.f32.partialorder %v657, 8.507059e+37
    %v659 = vand.u32 %v647, 2147483648
    %v660 = vor.u32 1.1754944e-38, %v659
    %v661 = vsel %vm658, %v660, %v656
    %v662 = vmul.f32 1.0, %v661
    %v663 = vadd.f32 %v615, %v319
    %v665 = vrot.slane %v663, 6
    %v667 = vmul.f32 %v639, %v665
    %v668 = vadd.f32 %v306, %v667
    %v669 = vtanh.pop %v668
    %v670 = vsub.f32 1.0, %v662
    %v671 = vmul.f32 %v670, %v669
    %v672 = vrot.slane %v552, 7
    %v674 = vmul.f32 %v662, %v672
    %v675 = vadd.f32 %v671, %v674
    %v677 = vrot.slane %v675, 2
    %v678 = vsel %vm172, %v677, 0
    %680 = vmatpush.msra.mxu0 0.0
    %681 = vmatpush.msra.mxu0 0.0
    %682 = vmatpush.msra.mxu0 0.0
    %683 = vmatpush.msra.mxu0 0.0
    %684 = vmatpush.msra.mxu0 0.0
    %685 = vmatpush.msra.mxu0 0.0
    %686 = vmatpush.msra.mxu0 0.0
    %687 = vmatpush.msra.mxu0 0.0
    %688 = vmatpush.msra.mxu0 0.0
    %689 = vmatpush.msra.mxu0 0.0
    %690 = vmatpush.msra.mxu0 0.0
    %691 = vmatpush.msra.mxu0 0.0
    %692 = vmatpush.msra.mxu0 %v316
    %693 = vmatpush.msra.mxu0 %v313
    %694 = vmatpush.msra.mxu0 %v310
    %695 = vmatpush.msra.mxu0 %v307
    %696 = vmatmul.f32.gmra.mxu0 %v678
    %v697 = vpop.f32.mrf.mxu0
    %v698 = vadd.f32 0.0, %v697
    %699 = vdwg.mxu0
    %700 = vmatpush.msra.mxu0 0.0
    %701 = vmatpush.msra.mxu0 0.0
    %702 = vmatpush.msra.mxu0 0.0
    %703 = vmatpush.msra.mxu0 0.0
    %704 = vmatpush.msra.mxu0 0.0
    %705 = vmatpush.msra.mxu0 0.0
    %706 = vmatpush.msra.mxu0 0.0
    %707 = vmatpush.msra.mxu0 0.0
    %708 = vmatpush.msra.mxu0 0.0
    %709 = vmatpush.msra.mxu0 0.0
    %710 = vmatpush.msra.mxu0 0.0
    %711 = vmatpush.msra.mxu0 0.0
    %712 = vmatpush.msra.mxu0 %v317
    %713 = vmatpush.msra.mxu0 %v314
    %714 = vmatpush.msra.mxu0 %v311
    %715 = vmatpush.msra.mxu0 %v308
    %716 = vmatmul.f32.gmra.mxu0 %v678
    %v717 = vpop.f32.mrf.mxu0
    %v718 = vadd.f32 0.0, %v717
    %719 = vdwg.mxu0
    %720 = vmatpush.msra.mxu0 0.0
    %721 = vmatpush.msra.mxu0 0.0
    %722 = vmatpush.msra.mxu0 0.0
    %723 = vmatpush.msra.mxu0 0.0
    %724 = vmatpush.msra.mxu0 0.0
    %725 = vmatpush.msra.mxu0 0.0
    %726 = vmatpush.msra.mxu0 0.0
    %727 = vmatpush.msra.mxu0 0.0
    %728 = vmatpush.msra.mxu0 0.0
    %729 = vmatpush.msra.mxu0 0.0
    %730 = vmatpush.msra.mxu0 0.0
    %731 = vmatpush.msra.mxu0 0.0
    %732 = vmatpush.msra.mxu0 %v318
    %733 = vmatpush.msra.mxu0 %v315
    %734 = vmatpush.msra.mxu0 %v312
    %735 = vmatpush.msra.mxu0 %v309
    %736 = vmatmul.f32.gmra.mxu0 %v678
    %v737 = vpop.f32.mrf.mxu0
    %v738 = vadd.f32 0.0, %v737
    %739 = vdwg.mxu0
    %v741 = vrot.slane %v698, 5
    %v743 = vadd.f32 %v304, %v741
    %v744 = vxor.u32 %v743, 2147483648
    %v745 = vmul.f32 %v744, 1.442695
    %v746 = vpow.pop %v745
    %v747 = vadd.f32 %v746, 1.0
    %v748 = vrcp.pop %v747
    %v749 = vmul.f32 %v747, %v748
    %v750 = vsub.f32 1.0, %v749
    %v751 = vmul.f32 %v748, %v750
    %v752 = vadd.f32 %v748, %v751
    %vm753 = vweird.f32 %v747
    %vm754 = vweird.f32 %v748
    %vm755 = vmor %vm753, %vm754
    %v756 = vsel %vm755, %v748, %v752
    %v757 = vand.u32 2147483647, %v747
    %vm758 = vcmp.eq.f32.partialorder %v757, 8.507059e+37
    %v759 = vand.u32 %v747, 2147483648
    %v760 = vor.u32 1.1754944e-38, %v759
    %v761 = vsel %vm758, %v760, %v756
    %v762 = vmul.f32 1.0, %v761
    %v764 = vrot.slane %v718, 5
    %v766 = vadd.f32 %v305, %v764
    %v767 = vxor.u32 %v766, 2147483648
    %v768 = vmul.f32 %v767, 1.442695
    %v769 = vpow.pop %v768
    %v770 = vadd.f32 %v769, 1.0
    %v771 = vrcp.pop %v770
    %v772 = vmul.f32 %v770, %v771
    %v773 = vsub.f32 1.0, %v772
    %v774 = vmul.f32 %v771, %v773
    %v775 = vadd.f32 %v771, %v774
    %vm776 = vweird.f32 %v770
    %vm777 = vweird.f32 %v771
    %vm778 = vmor %vm776, %vm777
    %v779 = vsel %vm778, %v771, %v775
    %v780 = vand.u32 2147483647, %v770
    %vm781 = vcmp.eq.f32.partialorder %v780, 8.507059e+37
    %v782 = vand.u32 %v770, 2147483648
    %v783 = vor.u32 1.1754944e-38, %v782
    %v784 = vsel %vm781, %v783, %v779
    %v785 = vmul.f32 1.0, %v784
    %v786 = vadd.f32 %v738, %v319
    %v788 = vrot.slane %v786, 5
    %v790 = vmul.f32 %v762, %v788
    %v791 = vadd.f32 %v306, %v790
    %v792 = vtanh.pop %v791
    %v793 = vsub.f32 1.0, %v785
    %v794 = vmul.f32 %v793, %v792
    %v795 = vrot.slane %v675, 7
    %v797 = vmul.f32 %v785, %v795
    %v798 = vadd.f32 %v794, %v797
    %v800 = vrot.slane %v798, 3
    %v801 = vsel %vm172, %v800, 0
    %803 = vmatpush.msra.mxu0 0.0
    %804 = vmatpush.msra.mxu0 0.0
    %805 = vmatpush.msra.mxu0 0.0
    %806 = vmatpush.msra.mxu0 0.0
    %807 = vmatpush.msra.mxu0 0.0
    %808 = vmatpush.msra.mxu0 0.0
    %809 = vmatpush.msra.mxu0 0.0
    %810 = vmatpush.msra.mxu0 0.0
    %811 = vmatpush.msra.mxu0 0.0
    %812 = vmatpush.msra.mxu0 0.0
    %813 = vmatpush.msra.mxu0 0.0
    %814 = vmatpush.msra.mxu0 0.0
    %815 = vmatpush.msra.mxu0 %v316
    %816 = vmatpush.msra.mxu0 %v313
    %817 = vmatpush.msra.mxu0 %v310
    %818 = vmatpush.msra.mxu0 %v307
    %819 = vmatmul.f32.gmra.mxu0 %v801
    %v820 = vpop.f32.mrf.mxu0
    %v821 = vadd.f32 0.0, %v820
    %822 = vdwg.mxu0
    %823 = vmatpush.msra.mxu0 0.0
    %824 = vmatpush.msra.mxu0 0.0
    %825 = vmatpush.msra.mxu0 0.0
    %826 = vmatpush.msra.mxu0 0.0
    %827 = vmatpush.msra.mxu0 0.0
    %828 = vmatpush.msra.mxu0 0.0
    %829 = vmatpush.msra.mxu0 0.0
    %830 = vmatpush.msra.mxu0 0.0
    %831 = vmatpush.msra.mxu0 0.0
    %832 = vmatpush.msra.mxu0 0.0
    %833 = vmatpush.msra.mxu0 0.0
    %834 = vmatpush.msra.mxu0 0.0
    %835 = vmatpush.msra.mxu0 %v317
    %836 = vmatpush.msra.mxu0 %v314
    %837 = vmatpush.msra.mxu0 %v311
    %838 = vmatpush.msra.mxu0 %v308
    %839 = vmatmul.f32.gmra.mxu0 %v801
    %v840 = vpop.f32.mrf.mxu0
    %v841 = vadd.f32 0.0, %v840
    %842 = vdwg.mxu0
    %843 = vmatpush.msra.mxu0 0.0
    %844 = vmatpush.msra.mxu0 0.0
    %845 = vmatpush.msra.mxu0 0.0
    %846 = vmatpush.msra.mxu0 0.0
    %847 = vmatpush.msra.mxu0 0.0
    %848 = vmatpush.msra.mxu0 0.0
    %849 = vmatpush.msra.mxu0 0.0
    %850 = vmatpush.msra.mxu0 0.0
    %851 = vmatpush.msra.mxu0 0.0
    %852 = vmatpush.msra.mxu0 0.0
    %853 = vmatpush.msra.mxu0 0.0
    %854 = vmatpush.msra.mxu0 0.0
    %855 = vmatpush.msra.mxu0 %v318
    %856 = vmatpush.msra.mxu0 %v315
    %857 = vmatpush.msra.mxu0 %v312
    %858 = vmatpush.msra.mxu0 %v309
    %859 = vmatmul.f32.gmra.mxu0 %v801
    %v860 = vpop.f32.mrf.mxu0
    %v861 = vadd.f32 0.0, %v860
    %862 = vdwg.mxu0
    %v864 = vrot.slane %v821, 4
    %v866 = vadd.f32 %v304, %v864
    %v867 = vxor.u32 %v866, 2147483648
    %v868 = vmul.f32 %v867, 1.442695
    %v869 = vpow.pop %v868
    %v870 = vadd.f32 %v869, 1.0
    %v871 = vrcp.pop %v870
    %v872 = vmul.f32 %v870, %v871
    %v873 = vsub.f32 1.0, %v872
    %v874 = vmul.f32 %v871, %v873
    %v875 = vadd.f32 %v871, %v874
    %vm876 = vweird.f32 %v870
    %vm877 = vweird.f32 %v871
    %vm878 = vmor %vm876, %vm877
    %v879 = vsel %vm878, %v871, %v875
    %v880 = vand.u32 2147483647, %v870
    %vm881 = vcmp.eq.f32.partialorder %v880, 8.507059e+37
    %v882 = vand.u32 %v870, 2147483648
    %v883 = vor.u32 1.1754944e-38, %v882
    %v884 = vsel %vm881, %v883, %v879
    %v885 = vmul.f32 1.0, %v884
    %v887 = vrot.slane %v841, 4
    %v889 = vadd.f32 %v305, %v887
    %v890 = vxor.u32 %v889, 2147483648
    %v891 = vmul.f32 %v890, 1.442695
    %v892 = vpow.pop %v891
    %v893 = vadd.f32 %v892, 1.0
    %v894 = vrcp.pop %v893
    %v895 = vmul.f32 %v893, %v894
    %v896 = vsub.f32 1.0, %v895
    %v897 = vmul.f32 %v894, %v896
    %v898 = vadd.f32 %v894, %v897
    %vm899 = vweird.f32 %v893
    %vm900 = vweird.f32 %v894
    %vm901 = vmor %vm899, %vm900
    %v902 = vsel %vm901, %v894, %v898
    %v903 = vand.u32 2147483647, %v893
    %vm904 = vcmp.eq.f32.partialorder %v903, 8.507059e+37
    %v905 = vand.u32 %v893, 2147483648
    %v906 = vor.u32 1.1754944e-38, %v905
    %v907 = vsel %vm904, %v906, %v902
    %v908 = vmul.f32 1.0, %v907
    %v909 = vadd.f32 %v861, %v319
    %v911 = vrot.slane %v909, 4
    %v913 = vmul.f32 %v885, %v911
    %v914 = vadd.f32 %v306, %v913
    %v915 = vtanh.pop %v914
    %v916 = vsub.f32 1.0, %v908
    %v917 = vmul.f32 %v916, %v915
    %v918 = vrot.slane %v798, 7
    %v920 = vmul.f32 %v908, %v918
    %v921 = vadd.f32 %v917, %v920
    %v923 = vrot.slane %v921, 4
    %v924 = vsel %vm172, %v923, 0
    %926 = vmatpush.msra.mxu0 0.0
    %927 = vmatpush.msra.mxu0 0.0
    %928 = vmatpush.msra.mxu0 0.0
    %929 = vmatpush.msra.mxu0 0.0
    %930 = vmatpush.msra.mxu0 0.0
    %931 = vmatpush.msra.mxu0 0.0
    %932 = vmatpush.msra.mxu0 0.0
    %933 = vmatpush.msra.mxu0 0.0
    %934 = vmatpush.msra.mxu0 0.0
    %935 = vmatpush.msra.mxu0 0.0
    %936 = vmatpush.msra.mxu0 0.0
    %937 = vmatpush.msra.mxu0 0.0
    %938 = vmatpush.msra.mxu0 %v316
    %939 = vmatpush.msra.mxu0 %v313
    %940 = vmatpush.msra.mxu0 %v310
    %941 = vmatpush.msra.mxu0 %v307
    %942 = vmatmul.f32.gmra.mxu0 %v924
    %v943 = vpop.f32.mrf.mxu0
    %v944 = vadd.f32 0.0, %v943
    %945 = vdwg.mxu0
    %946 = vmatpush.msra.mxu0 0.0
    %947 = vmatpush.msra.mxu0 0.0
    %948 = vmatpush.msra.mxu0 0.0
    %949 = vmatpush.msra.mxu0 0.0
    %950 = vmatpush.msra.mxu0 0.0
    %951 = vmatpush.msra.mxu0 0.0
    %952 = vmatpush.msra.mxu0 0.0
    %953 = vmatpush.msra.mxu0 0.0
    %954 = vmatpush.msra.mxu0 0.0
    %955 = vmatpush.msra.mxu0 0.0
    %956 = vmatpush.msra.mxu0 0.0
    %957 = vmatpush.msra.mxu0 0.0
    %958 = vmatpush.msra.mxu0 %v317
    %959 = vmatpush.msra.mxu0 %v314
    %960 = vmatpush.msra.mxu0 %v311
    %961 = vmatpush.msra.mxu0 %v308
    %962 = vmatmul.f32.gmra.mxu0 %v924
    %v963 = vpop.f32.mrf.mxu0
    %v964 = vadd.f32 0.0, %v963
    %965 = vdwg.mxu0
    %966 = vmatpush.msra.mxu0 0.0
    %967 = vmatpush.msra.mxu0 0.0
    %968 = vmatpush.msra.mxu0 0.0
    %969 = vmatpush.msra.mxu0 0.0
    %970 = vmatpush.msra.mxu0 0.0
    %971 = vmatpush.msra.mxu0 0.0
    %972 = vmatpush.msra.mxu0 0.0
    %973 = vmatpush.msra.mxu0 0.0
    %974 = vmatpush.msra.mxu0 0.0
    %975 = vmatpush.msra.mxu0 0.0
    %976 = vmatpush.msra.mxu0 0.0
    %977 = vmatpush.msra.mxu0 0.0
    %978 = vmatpush.msra.mxu0 %v318
    %979 = vmatpush.msra.mxu0 %v315
    %980 = vmatpush.msra.mxu0 %v312
    %981 = vmatpush.msra.mxu0 %v309
    %982 = vmatmul.f32.gmra.mxu0 %v924
    %v983 = vpop.f32.mrf.mxu0
    %v984 = vadd.f32 0.0, %v983
    %985 = vdwg.mxu0
    %v987 = vrot.slane %v944, 3
    %v989 = vadd.f32 %v304, %v987
    %v990 = vxor.u32 %v989, 2147483648
    %v991 = vmul.f32 %v990, 1.442695
    %v992 = vpow.pop %v991
    %v993 = vadd.f32 %v992, 1.0
    %v994 = vrcp.pop %v993
    %v995 = vmul.f32 %v993, %v994
    %v996 = vsub.f32 1.0, %v995
    %v997 = vmul.f32 %v994, %v996
    %v998 = vadd.f32 %v994, %v997
    %vm999 = vweird.f32 %v993
    %vm1000 = vweird.f32 %v994
    %vm1001 = vmor %vm999, %vm1000
    %v1002 = vsel %vm1001, %v994, %v998
    %v1003 = vand.u32 2147483647, %v993
    %vm1004 = vcmp.eq.f32.partialorder %v1003, 8.507059e+37
    %v1005 = vand.u32 %v993, 2147483648
    %v1006 = vor.u32 1.1754944e-38, %v1005
    %v1007 = vsel %vm1004, %v1006, %v1002
    %v1008 = vmul.f32 1.0, %v1007
    %v1010 = vrot.slane %v964, 3
    %v1012 = vadd.f32 %v305, %v1010
    %v1013 = vxor.u32 %v1012, 2147483648
    %v1014 = vmul.f32 %v1013, 1.442695
    %v1015 = vpow.pop %v1014
    %v1016 = vadd.f32 %v1015, 1.0
    %v1017 = vrcp.pop %v1016
    %v1018 = vmul.f32 %v1016, %v1017
    %v1019 = vsub.f32 1.0, %v1018
    %v1020 = vmul.f32 %v1017, %v1019
    %v1021 = vadd.f32 %v1017, %v1020
    %vm1022 = vweird.f32 %v1016
    %vm1023 = vweird.f32 %v1017
    %vm1024 = vmor %vm1022, %vm1023
    %v1025 = vsel %vm1024, %v1017, %v1021
    %v1026 = vand.u32 2147483647, %v1016
    %vm1027 = vcmp.eq.f32.partialorder %v1026, 8.507059e+37
    %v1028 = vand.u32 %v1016, 2147483648
    %v1029 = vor.u32 1.1754944e-38, %v1028
    %v1030 = vsel %vm1027, %v1029, %v1025
    %v1031 = vmul.f32 1.0, %v1030
    %v1032 = vadd.f32 %v984, %v319
    %v1034 = vrot.slane %v1032, 3
    %v1036 = vmul.f32 %v1008, %v1034
    %v1037 = vadd.f32 %v306, %v1036
    %v1038 = vtanh.pop %v1037
    %v1039 = vsub.f32 1.0, %v1031
    %v1040 = vmul.f32 %v1039, %v1038
    %v1041 = vrot.slane %v921, 7
    %v1043 = vmul.f32 %v1031, %v1041
    %v1044 = vadd.f32 %v1040, %v1043
    %v1046 = vrot.slane %v1044, 5
    %v1047 = vsel %vm172, %v1046, 0
    %1049 = vmatpush.msra.mxu0 0.0
    %1050 = vmatpush.msra.mxu0 0.0
    %1051 = vmatpush.msra.mxu0 0.0
    %1052 = vmatpush.msra.mxu0 0.0
    %1053 = vmatpush.msra.mxu0 0.0
    %1054 = vmatpush.msra.mxu0 0.0
    %1055 = vmatpush.msra.mxu0 0.0
    %1056 = vmatpush.msra.mxu0 0.0
    %1057 = vmatpush.msra.mxu0 0.0
    %1058 = vmatpush.msra.mxu0 0.0
    %1059 = vmatpush.msra.mxu0 0.0
    %1060 = vmatpush.msra.mxu0 0.0
    %1061 = vmatpush.msra.mxu0 %v316
    %1062 = vmatpush.msra.mxu0 %v313
    %1063 = vmatpush.msra.mxu0 %v310
    %1064 = vmatpush.msra.mxu0 %v307
    %1065 = vmatmul.f32.gmra.mxu0 %v1047
    %v1066 = vpop.f32.mrf.mxu0
    %v1067 = vadd.f32 0.0, %v1066
    %1068 = vdwg.mxu0
    %1069 = vmatpush.msra.mxu0 0.0
    %1070 = vmatpush.msra.mxu0 0.0
    %1071 = vmatpush.msra.mxu0 0.0
    %1072 = vmatpush.msra.mxu0 0.0
    %1073 = vmatpush.msra.mxu0 0.0
    %1074 = vmatpush.msra.mxu0 0.0
    %1075 = vmatpush.msra.mxu0 0.0
    %1076 = vmatpush.msra.mxu0 0.0
    %1077 = vmatpush.msra.mxu0 0.0
    %1078 = vmatpush.msra.mxu0 0.0
    %1079 = vmatpush.msra.mxu0 0.0
    %1080 = vmatpush.msra.mxu0 0.0
    %1081 = vmatpush.msra.mxu0 %v317
    %1082 = vmatpush.msra.mxu0 %v314
    %1083 = vmatpush.msra.mxu0 %v311
    %1084 = vmatpush.msra.mxu0 %v308
    %1085 = vmatmul.f32.gmra.mxu0 %v1047
    %v1086 = vpop.f32.mrf.mxu0
    %v1087 = vadd.f32 0.0, %v1086
    %1088 = vdwg.mxu0
    %1089 = vmatpush.msra.mxu0 0.0
    %1090 = vmatpush.msra.mxu0 0.0
    %1091 = vmatpush.msra.mxu0 0.0
    %1092 = vmatpush.msra.mxu0 0.0
    %1093 = vmatpush.msra.mxu0 0.0
    %1094 = vmatpush.msra.mxu0 0.0
    %1095 = vmatpush.msra.mxu0 0.0
    %1096 = vmatpush.msra.mxu0 0.0
    %1097 = vmatpush.msra.mxu0 0.0
    %1098 = vmatpush.msra.mxu0 0.0
    %1099 = vmatpush.msra.mxu0 0.0
    %1100 = vmatpush.msra.mxu0 0.0
    %1101 = vmatpush.msra.mxu0 %v318
    %1102 = vmatpush.msra.mxu0 %v315
    %1103 = vmatpush.msra.mxu0 %v312
    %1104 = vmatpush.msra.mxu0 %v309
    %1105 = vmatmul.f32.gmra.mxu0 %v1047
    %v1106 = vpop.f32.mrf.mxu0
    %v1107 = vadd.f32 0.0, %v1106
    %1108 = vdwg.mxu0
    %v1110 = vrot.slane %v1067, 2
    %v1112 = vadd.f32 %v304, %v1110
    %v1113 = vxor.u32 %v1112, 2147483648
    %v1114 = vmul.f32 %v1113, 1.442695
    %v1115 = vpow.pop %v1114
    %v1116 = vadd.f32 %v1115, 1.0
    %v1117 = vrcp.pop %v1116
    %v1118 = vmul.f32 %v1116, %v1117
    %v1119 = vsub.f32 1.0, %v1118
    %v1120 = vmul.f32 %v1117, %v1119
    %v1121 = vadd.f32 %v1117, %v1120
    %vm1122 = vweird.f32 %v1116
    %vm1123 = vweird.f32 %v1117
    %vm1124 = vmor %vm1122, %vm1123
    %v1125 = vsel %vm1124, %v1117, %v1121
    %v1126 = vand.u32 2147483647, %v1116
    %vm1127 = vcmp.eq.f32.partialorder %v1126, 8.507059e+37
    %v1128 = vand.u32 %v1116, 2147483648
    %v1129 = vor.u32 1.1754944e-38, %v1128
    %v1130 = vsel %vm1127, %v1129, %v1125
    %v1131 = vmul.f32 1.0, %v1130
    %v1133 = vrot.slane %v1087, 2
    %v1135 = vadd.f32 %v305, %v1133
    %v1136 = vxor.u32 %v1135, 2147483648
    %v1137 = vmul.f32 %v1136, 1.442695
    %v1138 = vpow.pop %v1137
    %v1139 = vadd.f32 %v1138, 1.0
    %v1140 = vrcp.pop %v1139
    %v1141 = vmul.f32 %v1139, %v1140
    %v1142 = vsub.f32 1.0, %v1141
    %v1143 = vmul.f32 %v1140, %v1142
    %v1144 = vadd.f32 %v1140, %v1143
    %vm1145 = vweird.f32 %v1139
    %vm1146 = vweird.f32 %v1140
    %vm1147 = vmor %vm1145, %vm1146
    %v1148 = vsel %vm1147, %v1140, %v1144
    %v1149 = vand.u32 2147483647, %v1139
    %vm1150 = vcmp.eq.f32.partialorder %v1149, 8.507059e+37
    %v1151 = vand.u32 %v1139, 2147483648
    %v1152 = vor.u32 1.1754944e-38, %v1151
    %v1153 = vsel %vm1150, %v1152, %v1148
    %v1154 = vmul.f32 1.0, %v1153
    %v1155 = vadd.f32 %v1107, %v319
    %v1157 = vrot.slane %v1155, 2
    %v1159 = vmul.f32 %v1131, %v1157
    %v1160 = vadd.f32 %v306, %v1159
    %v1161 = vtanh.pop %v1160
    %v1162 = vsub.f32 1.0, %v1154
    %v1163 = vmul.f32 %v1162, %v1161
    %v1164 = vrot.slane %v1044, 7
    %v1166 = vmul.f32 %v1154, %v1164
    %v1167 = vadd.f32 %v1163, %v1166
    %v1169 = vrot.slane %v1167, 6
    %v1170 = vsel %vm172, %v1169, 0
    %1172 = vmatpush.msra.mxu0 0.0
    %1173 = vmatpush.msra.mxu0 0.0
    %1174 = vmatpush.msra.mxu0 0.0
    %1175 = vmatpush.msra.mxu0 0.0
    %1176 = vmatpush.msra.mxu0 0.0
    %1177 = vmatpush.msra.mxu0 0.0
    %1178 = vmatpush.msra.mxu0 0.0
    %1179 = vmatpush.msra.mxu0 0.0
    %1180 = vmatpush.msra.mxu0 0.0
    %1181 = vmatpush.msra.mxu0 0.0
    %1182 = vmatpush.msra.mxu0 0.0
    %1183 = vmatpush.msra.mxu0 0.0
    %1184 = vmatpush.msra.mxu0 %v316
    %1185 = vmatpush.msra.mxu0 %v313
    %1186 = vmatpush.msra.mxu0 %v310
    %1187 = vmatpush.msra.mxu0 %v307
    %1188 = vmatmul.f32.gmra.mxu0 %v1170
    %v1189 = vpop.f32.mrf.mxu0
    %v1190 = vadd.f32 0.0, %v1189
    %1191 = vdwg.mxu0
    %1192 = vmatpush.msra.mxu0 0.0
    %1193 = vmatpush.msra.mxu0 0.0
    %1194 = vmatpush.msra.mxu0 0.0
    %1195 = vmatpush.msra.mxu0 0.0
    %1196 = vmatpush.msra.mxu0 0.0
    %1197 = vmatpush.msra.mxu0 0.0
    %1198 = vmatpush.msra.mxu0 0.0
    %1199 = vmatpush.msra.mxu0 0.0
    %1200 = vmatpush.msra.mxu0 0.0
    %1201 = vmatpush.msra.mxu0 0.0
    %1202 = vmatpush.msra.mxu0 0.0
    %1203 = vmatpush.msra.mxu0 0.0
    %1204 = vmatpush.msra.mxu0 %v317
    %1205 = vmatpush.msra.mxu0 %v314
    %1206 = vmatpush.msra.mxu0 %v311
    %1207 = vmatpush.msra.mxu0 %v308
    %1208 = vmatmul.f32.gmra.mxu0 %v1170
    %v1209 = vpop.f32.mrf.mxu0
    %v1210 = vadd.f32 0.0, %v1209
    %1211 = vdwg.mxu0
    %1212 = vmatpush.msra.mxu0 0.0
    %1213 = vmatpush.msra.mxu0 0.0
    %1214 = vmatpush.msra.mxu0 0.0
    %1215 = vmatpush.msra.mxu0 0.0
    %1216 = vmatpush.msra.mxu0 0.0
    %1217 = vmatpush.msra.mxu0 0.0
    %1218 = vmatpush.msra.mxu0 0.0
    %1219 = vmatpush.msra.mxu0 0.0
    %1220 = vmatpush.msra.mxu0 0.0
    %1221 = vmatpush.msra.mxu0 0.0
    %1222 = vmatpush.msra.mxu0 0.0
    %1223 = vmatpush.msra.mxu0 0.0
    %1224 = vmatpush.msra.mxu0 %v318
    %1225 = vmatpush.msra.mxu0 %v315
    %1226 = vmatpush.msra.mxu0 %v312
    %1227 = vmatpush.msra.mxu0 %v309
    %1228 = vmatmul.f32.gmra.mxu0 %v1170
    %v1229 = vpop.f32.mrf.mxu0
    %v1230 = vadd.f32 0.0, %v1229
    %1231 = vdwg.mxu0
    %v1233 = vrot.slane %v1190, 1
    %v1235 = vadd.f32 %v304, %v1233
    %v1236 = vxor.u32 %v1235, 2147483648
    %v1237 = vmul.f32 %v1236, 1.442695
    %v1238 = vpow.pop %v1237
    %v1239 = vadd.f32 %v1238, 1.0
    %v1240 = vrcp.pop %v1239
    %v1241 = vmul.f32 %v1239, %v1240
    %v1242 = vsub.f32 1.0, %v1241
    %v1243 = vmul.f32 %v1240, %v1242
    %v1244 = vadd.f32 %v1240, %v1243
    %vm1245 = vweird.f32 %v1239
    %vm1246 = vweird.f32 %v1240
    %vm1247 = vmor %vm1245, %vm1246
    %v1248 = vsel %vm1247, %v1240, %v1244
    %v1249 = vand.u32 2147483647, %v1239
    %vm1250 = vcmp.eq.f32.partialorder %v1249, 8.507059e+37
    %v1251 = vand.u32 %v1239, 2147483648
    %v1252 = vor.u32 1.1754944e-38, %v1251
    %v1253 = vsel %vm1250, %v1252, %v1248
    %v1254 = vmul.f32 1.0, %v1253
    %v1256 = vrot.slane %v1210, 1
    %v1258 = vadd.f32 %v305, %v1256
    %v1259 = vxor.u32 %v1258, 2147483648
    %v1260 = vmul.f32 %v1259, 1.442695
    %v1261 = vpow.pop %v1260
    %v1262 = vadd.f32 %v1261, 1.0
    %v1263 = vrcp.pop %v1262
    %v1264 = vmul.f32 %v1262, %v1263
    %v1265 = vsub.f32 1.0, %v1264
    %v1266 = vmul.f32 %v1263, %v1265
    %v1267 = vadd.f32 %v1263, %v1266
    %vm1268 = vweird.f32 %v1262
    %vm1269 = vweird.f32 %v1263
    %vm1270 = vmor %vm1268, %vm1269
    %v1271 = vsel %vm1270, %v1263, %v1267
    %v1272 = vand.u32 2147483647, %v1262
    %vm1273 = vcmp.eq.f32.partialorder %v1272, 8.507059e+37
    %v1274 = vand.u32 %v1262, 2147483648
    %v1275 = vor.u32 1.1754944e-38, %v1274
    %v1276 = vsel %vm1273, %v1275, %v1271
    %v1277 = vmul.f32 1.0, %v1276
    %v1278 = vadd.f32 %v1230, %v319
    %v1280 = vrot.slane %v1278, 1
    %v1282 = vmul.f32 %v1254, %v1280
    %v1283 = vadd.f32 %v306, %v1282
    %v1284 = vtanh.pop %v1283
    %v1285 = vsub.f32 1.0, %v1277
    %v1286 = vmul.f32 %v1285, %v1284
    %v1287 = vrot.slane %v1167, 7
    %v1289 = vmul.f32 %v1277, %v1287
    %v1290 = vadd.f32 %v1286, %v1289
    %vm1291 = vcmask 1040384
    %v1292 = vsel %vm1291, %v430, %v552
    %vm1293 = vcmask 1041408
    %v1294 = vsel %vm1293, %v1292, %v675
    %vm1295 = vcmask 1042432
    %v1296 = vsel %vm1295, %v1294, %v798
    %vm1297 = vcmask 1043456
    %v1298 = vsel %vm1297, %v1296, %v921
    %vm1299 = vcmask 1044480
    %v1300 = vsel %vm1299, %v1298, %v1044
    %vm1301 = vcmask 1045504
    %v1302 = vsel %vm1301, %v1300, %v1167
    %vm1303 = vcmask 1046528
    %v1304 = vsel %vm1303, %v1302, %v1290
    %vm1305 = vcmp.gt.f32.partialorder %v1304, 0.0
    %v1306 = vmin.f32 %v1304, 0.0
    %v1307 = vmul.f32 %v1306, 1.442695
    %v1308 = vpow.pop %v1307
    %v1309 = vsub.f32 %v1308, 1.0
    %v1310 = vmul.f32 %v1309, 1.6732632
    %v1311 = vsel %vm1305, %v1304, %v1310
    %v1312 = vmul.f32 %v1311, 1.050701
    %v1313 = vld [vmem:[#allocation8] sm:$0xff]
    %v1314 = vld [vmem:[#allocation8 + $0x8] sm:$0xff]
    %v1315 = vld [vmem:[#allocation8 + $0x10] sm:$0xff]
    %v1316 = vld [vmem:[#allocation8 + $0x18] sm:$0xff]
    %v1317 = vld [vmem:[%s8] sm:$0x1]
    %v1319 = vperm.slane %v1317, 0
    %v1322 = vsel %vm172, %v1312, 0
    %1324 = vmatpush.msra.mxu0 0.0
    %1325 = vmatpush.msra.mxu0 0.0
    %1326 = vmatpush.msra.mxu0 0.0
    %1327 = vmatpush.msra.mxu0 0.0
    %1328 = vmatpush.msra.mxu0 0.0
    %1329 = vmatpush.msra.mxu0 0.0
    %1330 = vmatpush.msra.mxu0 0.0
    %1331 = vmatpush.msra.mxu0 0.0
    %1332 = vmatpush.msra.mxu0 0.0
    %1333 = vmatpush.msra.mxu0 0.0
    %1334 = vmatpush.msra.mxu0 0.0
    %1335 = vmatpush.msra.mxu0 0.0
    %1336 = vmatpush.msra.mxu0 %v1316
    %1337 = vmatpush.msra.mxu0 %v1315
    %1338 = vmatpush.msra.mxu0 %v1314
    %1339 = vmatpush.msra.mxu0 %v1313
    %1340 = vmatmul.f32.gmra.mxu0 %v1322
    %v1341 = vpop.f32.mrf.mxu0
    %v1342 = vadd.f32 %v1319, %v1341
    %1343 = vdwg.mxu0
    %1344 = vmax.xlane.f32.xlu0 %v1342
    %v1345 = vpop.xlane.xlu0 %1344
    %v1346 = vsub.f32 %v1342, %v1345
    %v1347 = vmul.f32 %v1346, 1.442695
    %v1348 = vpow.pop %v1347
    %1349 = vadd.xlane.f32.xlu0 %v1348
    %v1350 = vpop.xlane.xlu0 %1349
    %v1351 = vlog2.pop %v1350
    %v1352 = vmul.f32 %v1351, 0.6931472
    %v1353 = vsub.f32 %v1346, %v1352
    %1354 = vst [vmem:[#allocation10] sm:$0xff] %v1353
    // Predicated region
    $region54: #{tpu_custom_call.1} parent=1 // pred_check
      _
    $region55: #{tpu_custom_call.1} parent=1 // pred_check_branch
      %1356 = sbr.rel (0) target = $region57
    $region56: #{tpu_custom_call.1} parent=1 // pred_region
      %1358 = vsyncadd [#allocation4], 0
      %s1360 = sshll.u32 [#allocation10], 4
      %s1361 = int_to_ptr.vmem [resolvable:$true] %s1360
      %s1362 = sshll.u32 %s9, 4
      %s1363 = int_to_ptr.hbm [resolvable:$true] %s1362
      %1365 = dma.vmem_to_hbm [thread:$0]  %s1361, 128, %s1363, [#allocation4]
    $region57: #{tpu_custom_call.1} parent=1 // pred_fallthru
      _
    // Predicated region
    $region58: #{tpu_custom_call.1} parent=1 // pred_check
      _
    $region59: #{tpu_custom_call.1} parent=1 // pred_check_branch
      %1367 = sbr.rel (0) target = $region61
    $region60: #{tpu_custom_call.1} parent=1 // pred_region
      %1369 = dma.done [#allocation4], 128
    $region61: #{tpu_custom_call.1} parent=1 // pred_fallthru
      _
    %1370 = vsyncpa [#allocation3], 1
    %1371 = vsyncpa [#allocation6], 1
    %1372 = vsyncpa [#allocation9], 1
    %1373 = vsyncpa [#allocation4], 1

</llo_original>
